<compile_context>
chip_gen: v6e
topology: v6e:2x2x1
jax: 0.10.0
libtpu: 0.0.40
codegen_flags: <defaults>
</compile_context>

<pallas_src>
import functools

import jax
import jax.numpy as jnp
import numpy as np
from jax.experimental import pallas as pl
from jax.experimental.pallas import tpu as pltpu


def _cdiv(a, b):
    return -(-a // b)


_COMPILER_PARAMS = pltpu.CompilerParams(
    dimension_semantics=("parallel", "parallel"),
    vmem_limit_bytes=48 * 1024 * 1024,  # safe on v7x (64 MiB phys) and below
)


# =============================================================================
# MelResNet: im2col'd conv_in + folded BN + ReLU, R residual blocks of
# (1x1 conv, BN, ReLU, 1x1 conv, BN, +res), then 1x1 conv_out with bias.
# All matmuls: bf16 operands, f32 accumulation.
# =============================================================================
def melresnet_kernel(x_ref, w_in_ref, s_in_ref, b_in_ref,
                     w1_ref, s1_ref, b1_ref,
                     w2_ref, s2_ref, b2_ref,
                     w_out_ref, bias_out_ref,
                     aux_ref):
    xw = x_ref[0]                                           # (tm, K*F) bf16
    h = jnp.dot(xw, w_in_ref[...], preferred_element_type=jnp.float32)
    h = jnp.maximum(h * s_in_ref[...] + b_in_ref[...], 0.0)
    n_res = w1_ref.shape[0]
    for i in range(n_res):
        y = jnp.dot(h.astype(jnp.bfloat16), w1_ref[i],
                    preferred_element_type=jnp.float32)
        y = jnp.maximum(y * s1_ref[i] + b1_ref[i], 0.0)
        y = jnp.dot(y.astype(jnp.bfloat16), w2_ref[i],
                    preferred_element_type=jnp.float32)
        h = y * s2_ref[i] + b2_ref[i] + h
    out = jnp.dot(h.astype(jnp.bfloat16), w_out_ref[...],
                  preferred_element_type=jnp.float32)
    aux_ref[0] = out + bias_out_ref[...]


def melresnet_pallas(x_btf, p, time_block=256):
    """x_btf: (B, T, F) float32 -> aux: (B, T_out, A) float32."""
    B, T, F = x_btf.shape
    K, _, C = p["w_in"].shape
    R = p["w1"].shape[0]
    A = p["w_out"].shape[1]
    T_out = T - (K - 1)
    if T_out <= 0:
        raise ValueError("time axis too short for conv_in (need T > 2*pad)")
    KF = K * F

    # im2col in the wrapper: one wide matmul replaces K sublane-offset slices.
    windows = jnp.concatenate(
        [x_btf[:, kk:kk + T_out, :] for kk in range(K)], axis=-1
    ).astype(jnp.bfloat16)                                  # (B, T_out, K*F)

    w_in_flat = p["w_in"].reshape(KF, C).astype(jnp.bfloat16)
    w1 = p["w1"].astype(jnp.bfloat16)
    w2 = p["w2"].astype(jnp.bfloat16)
    w_out = p["w_out"].astype(jnp.bfloat16)

    # time tile: full T_out when small, else 256 (multiple of 16 for bf16).
    tm = T_out if T_out <= time_block else time_block
    n_t = _cdiv(T_out, tm)

    def fixed(shape):
        return pl.BlockSpec(shape, lambda b, t: (0,) * len(shape))

    # NOTE: production A is usually 128 (lane-dense stores); the demo's A=16
    # gives masked stores but padding A here would only add extra HBM passes.
    return pl.pallas_call(
        melresnet_kernel,
        out_shape=jax.ShapeDtypeStruct((B, T_out, A), jnp.float32),
        grid=(B, n_t),
        in_specs=[
            pl.BlockSpec((1, tm, KF), lambda b, t: (b, t, 0)),
            fixed((KF, C)),
            fixed((1, C)), fixed((1, C)),
            fixed((R, C, C)), fixed((R, 1, C)), fixed((R, 1, C)),
            fixed((R, C, C)), fixed((R, 1, C)), fixed((R, 1, C)),
            fixed((C, A)), fixed((1, A)),
        ],
        out_specs=pl.BlockSpec((1, tm, A), lambda b, t: (b, t, 0)),
        compiler_params=_COMPILER_PARAMS,
    )(windows, w_in_flat, p["s_in"], p["b_in"],
      w1, p["s1"], p["b1"], w2, p["s2"], p["b2"],
      w_out, p["b_out"])


# =============================================================================
# Fused Stretch2d(scale, 1) + Conv2d(1, 1, (1, 2s+1), padding=(0, s)) with all
# weights = 1/(2s+1).  Each output sample is a fixed 3-tap combination of
# adjacent un-stretched samples, expressed as a small band-matrix MXU matmul.
# =============================================================================
def _stretch_box_matrix(scale, g):
    """Band matrix W (s*g, g+2): out[k*s+r] = W @ [x[k0-1], ..., x[k0+g]]."""
    s = scale
    w = np.zeros((s * g, g + 2), np.float32)
    inv = 1.0 / (2 * s + 1)
    for k in range(g):
        for r in range(s):
            row = k * s + r
            w[row, k] = (s - r) * inv        # x[k-1]
            w[row, k + 1] = s * inv          # x[k]
            w[row, k + 2] = (r + 1) * inv    # x[k+1]
    return jnp.asarray(w)


def stretch_box_kernel(x_ref, xl_ref, xr_ref, w_ref, o_ref, *,
                       scale, t_blk, chunk, t_total, needs_mask):
    x = x_ref[0]                                            # (t_blk, F) f32
    if needs_mask:
        # Ragged last time block: zero rows beyond the real sequence so the
        # conv's implicit zero padding is honoured; their outputs are dropped.
        t = pl.program_id(1)
        row = t * t_blk + jax.lax.broadcasted_iota(jnp.int32, (t_blk, 1), 0)
        x = jnp.where(row < t_total, x, 0.0)
    # 1-row halo on each side (zero at sequence ends == conv zero padding).
    xext = jnp.concatenate([xl_ref[0, 0], x, xr_ref[0, 0]], axis=0)
    w = w_ref[...]                                          # (s*chunk, chunk+2)
    for c in range(t_blk // chunk):
        win = xext[c * chunk:c * chunk + chunk + 2, :]      # (chunk+2, F)
        out = jnp.dot(w, win, preferred_element_type=jnp.float32)
        o_ref[0, c * scale * chunk:(c + 1) * scale * chunk, :] = out


def stretch_box_pallas(x_btf, scale):
    """(B, T, F) float32 -> (B, scale*T, F): stretch + averaging conv."""
    B, T, F = x_btf.shape
    s = int(scale)

    if T <= 128:
        chunk = t_blk = T          # single chunk / single time block
    else:
        chunk = 128
        t_blk = chunk * min(4, T // chunk)   # up to 512 input rows per block
    n_t = _cdiv(T, t_blk)
    needs_mask = (n_t * t_blk != T)

    # Tiny per-block neighbour columns provide the 1-element halo; no padding
    # or repetition of the large arrays in the wrapper.
    if n_t == 1:
        xl = jnp.zeros((B, 1, 1, F), jnp.float32)
        xr = jnp.zeros((B, 1, 1, F), jnp.float32)
    else:
        left = x_btf[:, t_blk - 1::t_blk, :][:, :n_t - 1, :]
        left = jnp.pad(left, ((0, 0), (1, 0), (0, 0)))       # (B, n_t, F)
        right = x_btf[:, t_blk::t_blk, :][:, :n_t - 1, :]
        right = jnp.pad(right, ((0, 0), (0, 1), (0, 0)))      # (B, n_t, F)
        xl = left[:, :, None, :]
        xr = right[:, :, None, :]

    w = _stretch_box_matrix(s, chunk)

    kernel = functools.partial(
        stretch_box_kernel, scale=s, t_blk=t_blk, chunk=chunk,
        t_total=T, needs_mask=needs_mask)

    return pl.pallas_call(
        kernel,
        out_shape=jax.ShapeDtypeStruct((B, s * T, F), jnp.float32),
        grid=(B, n_t),
        in_specs=[
            pl.BlockSpec((1, t_blk, F), lambda b, t: (b, t, 0)),
            pl.BlockSpec((1, 1, 1, F), lambda b, t: (b, t, 0, 0)),
            pl.BlockSpec((1, 1, 1, F), lambda b, t: (b, t, 0, 0)),
            pl.BlockSpec((s * chunk, chunk + 2), lambda b, t: (0, 0)),
        ],
        out_specs=pl.BlockSpec((1, s * t_blk, F), lambda b, t: (b, t, 0)),
        compiler_params=_COMPILER_PARAMS,
    )(x_btf, xl, xr, w)


# =============================================================================
# UpsampleNetwork.forward
# =============================================================================
def upsample_network_forward(m_bft, params, upsample_scales, pad):
    """m_bft: (B, feat, T) (PyTorch NCW). Returns (m (B,L,feat), aux (B,L,A))."""
    total = 1
    for s in upsample_scales:
        total *= int(s)
    indent = pad * total

    # One small transpose into (B, T, F); both branches use this layout, so no
    # transpose of the large upsampled output is ever needed.
    x_btf = jnp.transpose(m_bft, (0, 2, 1))

    # --- MelResNet branch ---
    aux = melresnet_pallas(x_btf, params)                   # (B, T-2*pad, A)
    # Stretch2d(total, 1).  The large aux write is unavoidable (it is a
    # returned output); the extra small-aux read is ~1/total of it.
    aux = jnp.repeat(aux, total, axis=1)

    # --- upsample branch: fused Stretch2d + averaging conv, per scale ---
    y = x_btf
    for s in upsample_scales:
        y = stretch_box_pallas(y, s)
    if indent > 0:                                          # guard pad == 0
        y = y[:, indent:-indent, :]
    return y, aux


# =============================================================================
# Deterministic parameter init (synthetic; BatchNorm folded to scale/shift).
# =============================================================================
def init_params(key, feat_size, compute_size, res_out_size, res_blocks, pad):
    K = 2 * pad + 1
    C = compute_size
    keys = jax.random.split(key, 8)

    def nrm(k, shape, s=0.2):
        return (s * jax.random.normal(k, shape)).astype(jnp.float32)

    def bn(k, shape):
        kg, kb, km, kv = jax.random.split(k, 4)
        gamma = 1.0 + 0.1 * jax.random.normal(kg, shape)
        beta = 0.1 * jax.random.normal(kb, shape)
        mean = 0.1 * jax.random.normal(km, shape)
        var = 0.5 + jax.random.uniform(kv, shape)
        scale = gamma * jax.lax.rsqrt(var + 1e-5)
        shift = beta - mean * scale
        return scale.astype(jnp.float32), shift.astype(jnp.float32)

    s_in, b_in = bn(keys[1], (1, C))
    s1, b1 = bn(keys[4], (res_blocks, 1, C))
    s2, b2 = bn(keys[5], (res_blocks, 1, C))
    return {
        "w_in": nrm(keys[0], (K, feat_size, C)),     # conv_in (K, C_in, C_out)
        "s_in": s_in, "b_in": b_in,
        "w1": nrm(keys[2], (res_blocks, C, C)),      # ResBlock conv1
        "w2": nrm(keys[3], (res_blocks, C, C)),      # ResBlock conv2
        "s1": s1, "b1": b1, "s2": s2, "b2": b2,
        "w_out": nrm(keys[6], (C, res_out_size)),    # conv_out weight
        "b_out": nrm(keys[7], (1, res_out_size)),    # conv_out bias
    }


# =============================================================================
# Pure-JAX reference (correctness check).  Matmuls use the same bf16-operand /
# f32-accumulation policy as the kernel; the upsample branch is the literal
# repeat -> pad -> (2s+1)-tap average in f32.
# =============================================================================
def _bf16_round(a):
    return a.astype(jnp.bfloat16).astype(jnp.float32)


def reference_forward(m_bft, p, upsample_scales, pad):
    hp = jax.lax.Precision.HIGHEST
    total = 1
    for s in upsample_scales:
        total *= int(s)
    indent = pad * total
    B, _, T = m_bft.shape
    K = p["w_in"].shape[0]
    T_out = T - (K - 1)
    x = jnp.transpose(m_bft, (0, 2, 1))                     # (B, T, F)

    h = jnp.zeros((B, T_out, p["w_in"].shape[2]), jnp.float32)
    for kk in range(K):
        h = h + jnp.einsum("btf,fc->btc", _bf16_round(x[:, kk:kk + T_out, :]),
                           _bf16_round(p["w_in"][kk]), precision=hp)
    h = jnp.maximum(h * p["s_in"] + p["b_in"], 0.0)
    for i in range(p["w1"].shape[0]):
        y = jnp.einsum("btc,cd->btd", _bf16_round(h), _bf16_round(p["w1"][i]),
                       precision=hp)
        y = jnp.maximum(y * p["s1"][i] + p["b1"][i], 0.0)
        y = jnp.einsum("btc,cd->btd", _bf16_round(y), _bf16_round(p["w2"][i]),
                       precision=hp)
        h = y * p["s2"][i] + p["b2"][i] + h
    aux = jnp.einsum("btc,ca->bta", _bf16_round(h), _bf16_round(p["w_out"]),
                     precision=hp) + p["b_out"]
    aux = jnp.repeat(aux, total, axis=1)

    y = x
    for s in upsample_scales:
        y = jnp.repeat(y, s, axis=1)
        yp = jnp.pad(y, ((0, 0), (s, s), (0, 0)))
        acc = jnp.zeros_like(y)
        for j in range(2 * s + 1):
            acc = acc + yp[:, j:j + y.shape[1], :]
        y = acc / (2 * s + 1)
    if indent > 0:
        y = y[:, indent:-indent, :]
    return y, aux


if __name__ == "__main__":
    B, T = 2, 16
    feat_size, compute_size, res_out_size = 16, 32, 16
    res_blocks, pad = 2, 2
    upsample_scales = (2, 2)
    total = 4
    L = (T - 2 * pad) * total

    key = jax.random.PRNGKey(0)
    kp, kx = jax.random.split(key)
    params = init_params(kp, feat_size, compute_size, res_out_size,
                         res_blocks, pad)
    m = jax.random.normal(kx, (B, feat_size, T), jnp.float32)

    fwd = jax.jit(functools.partial(upsample_network_forward,
                                    upsample_scales=upsample_scales, pad=pad))
    m_out, aux_out = fwd(m, params)
    jax.block_until_ready((m_out, aux_out))

    assert m_out.shape == (B, L, feat_size)
    assert aux_out.shape == (B, L, res_out_size)

    ref_m, ref_aux = reference_forward(m, params, upsample_scales, pad)
    assert jnp.allclose(m_out, ref_m, atol=2e-3, rtol=2e-3)
    assert jnp.allclose(aux_out, ref_aux, atol=2e-3, rtol=2e-3)

    print("KERNEL_OK")
</pallas_src>

<mosaic_0001>
module attributes {stable_mosaic.version = 11 : i64} {
  func.func @melresnet_kernel(%arg0: i32, %arg1: i32, %arg2: memref<1x12x80xbf16, #tpu.memory_space<vmem>>, %arg3: memref<80x32xbf16, #tpu.memory_space<vmem>>, %arg4: memref<1x32xf32, #tpu.memory_space<vmem>>, %arg5: memref<1x32xf32, #tpu.memory_space<vmem>>, %arg6: memref<2x32x32xbf16, #tpu.memory_space<vmem>>, %arg7: memref<2x1x32xf32, #tpu.memory_space<vmem>>, %arg8: memref<2x1x32xf32, #tpu.memory_space<vmem>>, %arg9: memref<2x32x32xbf16, #tpu.memory_space<vmem>>, %arg10: memref<2x1x32xf32, #tpu.memory_space<vmem>>, %arg11: memref<2x1x32xf32, #tpu.memory_space<vmem>>, %arg12: memref<32x16xbf16, #tpu.memory_space<vmem>>, %arg13: memref<1x16xf32, #tpu.memory_space<vmem>>, %arg14: memref<1x12x16xf32, #tpu.memory_space<vmem>>) attributes {dimension_semantics = [#tpu.dimension_semantics<parallel>, #tpu.dimension_semantics<parallel>], iteration_bounds = array<i64: 2, 1>, scalar_prefetch = 0 : i64, scratch_operands = 0 : i64, tpu.core_type = #tpu.core_type<tc>, window_params = [{transform_indices = @transform_0, window_bounds = array<i64: 1, 12, 80>}, {pipeline_mode = #tpu.pipeline_mode<synchronous>, transform_indices = @transform_1, window_bounds = array<i64: 80, 32>}, {pipeline_mode = #tpu.pipeline_mode<synchronous>, transform_indices = @transform_2, window_bounds = array<i64: 1, 32>}, {pipeline_mode = #tpu.pipeline_mode<synchronous>, transform_indices = @transform_3, window_bounds = array<i64: 1, 32>}, {pipeline_mode = #tpu.pipeline_mode<synchronous>, transform_indices = @transform_4, window_bounds = array<i64: 2, 32, 32>}, {pipeline_mode = #tpu.pipeline_mode<synchronous>, transform_indices = @transform_5, window_bounds = array<i64: 2, 1, 32>}, {pipeline_mode = #tpu.pipeline_mode<synchronous>, transform_indices = @transform_6, window_bounds = array<i64: 2, 1, 32>}, {pipeline_mode = #tpu.pipeline_mode<synchronous>, transform_indices = @transform_7, window_bounds = array<i64: 2, 32, 32>}, {pipeline_mode = #tpu.pipeline_mode<synchronous>, transform_indices = @transform_8, window_bounds = array<i64: 2, 1, 32>}, {pipeline_mode = #tpu.pipeline_mode<synchronous>, transform_indices = @transform_9, window_bounds = array<i64: 2, 1, 32>}, {pipeline_mode = #tpu.pipeline_mode<synchronous>, transform_indices = @transform_10, window_bounds = array<i64: 32, 16>}, {pipeline_mode = #tpu.pipeline_mode<synchronous>, transform_indices = @transform_11, window_bounds = array<i64: 1, 16>}, {transform_indices = @transform_12, window_bounds = array<i64: 1, 12, 16>}]} {
    %c0 = arith.constant 0 : index
    %c0_0 = arith.constant 0 : index
    %c0_1 = arith.constant 0 : index
    %0 = vector.load %arg2[%c0, %c0_0, %c0_1] : memref<1x12x80xbf16, #tpu.memory_space<vmem>>, vector<1x12x80xbf16>
    %1 = vector.shape_cast %0 : vector<1x12x80xbf16> to vector<12x80xbf16>
    %c0_2 = arith.constant 0 : index
    %c0_3 = arith.constant 0 : index
    %2 = vector.load %arg3[%c0_2, %c0_3] : memref<80x32xbf16, #tpu.memory_space<vmem>>, vector<80x32xbf16>
    %cst = arith.constant dense<0.000000e+00> : vector<12x32xf32>
    %3 = tpu.matmul %1, %2, %cst {dimension_numbers = #tpu.dot_dimension_numbers<[1], [0], [0], [1], [0, 0, 1, 1], [], []>} : vector<12x80xbf16>, vector<80x32xbf16>, vector<12x32xf32> -> vector<12x32xf32>
    %c0_4 = arith.constant 0 : index
    %c0_5 = arith.constant 0 : index
    %4 = vector.load %arg4[%c0_4, %c0_5] : memref<1x32xf32, #tpu.memory_space<vmem>>, vector<1x32xf32>
    %5 = vector.broadcast %4 : vector<1x32xf32> to vector<12x32xf32>
    %6 = arith.mulf %3, %5 : vector<12x32xf32>
    %c0_6 = arith.constant 0 : index
    %c0_7 = arith.constant 0 : index
    %7 = vector.load %arg5[%c0_6, %c0_7] : memref<1x32xf32, #tpu.memory_space<vmem>>, vector<1x32xf32>
    %8 = vector.broadcast %7 : vector<1x32xf32> to vector<12x32xf32>
    %9 = arith.addf %6, %8 : vector<12x32xf32>
    %cst_8 = arith.constant 0.000000e+00 : f32
    %10 = vector.broadcast %cst_8 : f32 to vector<12x32xf32>
    %11 = arith.maximumf %9, %10 : vector<12x32xf32>
    %12 = arith.truncf %11 : vector<12x32xf32> to vector<12x32xbf16>
    %c0_9 = arith.constant 0 : index
    %c0_10 = arith.constant 0 : index
    %c0_11 = arith.constant 0 : index
    %13 = vector.load %arg6[%c0_9, %c0_10, %c0_11] : memref<2x32x32xbf16, #tpu.memory_space<vmem>>, vector<1x32x32xbf16>
    %14 = vector.shape_cast %13 : vector<1x32x32xbf16> to vector<32x32xbf16>
    %cst_12 = arith.constant dense<0.000000e+00> : vector<12x32xf32>
    %15 = tpu.matmul %12, %14, %cst_12 {dimension_numbers = #tpu.dot_dimension_numbers<[1], [0], [0], [1], [0, 0, 1, 1], [], []>} : vector<12x32xbf16>, vector<32x32xbf16>, vector<12x32xf32> -> vector<12x32xf32>
    %c0_13 = arith.constant 0 : index
    %c0_14 = arith.constant 0 : index
    %c0_15 = arith.constant 0 : index
    %16 = vector.load %arg7[%c0_13, %c0_14, %c0_15] : memref<2x1x32xf32, #tpu.memory_space<vmem>>, vector<1x1x32xf32>
    %17 = vector.shape_cast %16 : vector<1x1x32xf32> to vector<1x32xf32>
    %18 = vector.broadcast %17 : vector<1x32xf32> to vector<12x32xf32>
    %19 = arith.mulf %15, %18 : vector<12x32xf32>
    %c0_16 = arith.constant 0 : index
    %c0_17 = arith.constant 0 : index
    %c0_18 = arith.constant 0 : index
    %20 = vector.load %arg8[%c0_16, %c0_17, %c0_18] : memref<2x1x32xf32, #tpu.memory_space<vmem>>, vector<1x1x32xf32>
    %21 = vector.shape_cast %20 : vector<1x1x32xf32> to vector<1x32xf32>
    %22 = vector.broadcast %21 : vector<1x32xf32> to vector<12x32xf32>
    %23 = arith.addf %19, %22 : vector<12x32xf32>
    %cst_19 = arith.constant 0.000000e+00 : f32
    %24 = vector.broadcast %cst_19 : f32 to vector<12x32xf32>
    %25 = arith.maximumf %23, %24 : vector<12x32xf32>
    %26 = arith.truncf %25 : vector<12x32xf32> to vector<12x32xbf16>
    %c0_20 = arith.constant 0 : index
    %c0_21 = arith.constant 0 : index
    %c0_22 = arith.constant 0 : index
    %27 = vector.load %arg9[%c0_20, %c0_21, %c0_22] : memref<2x32x32xbf16, #tpu.memory_space<vmem>>, vector<1x32x32xbf16>
    %28 = vector.shape_cast %27 : vector<1x32x32xbf16> to vector<32x32xbf16>
    %cst_23 = arith.constant dense<0.000000e+00> : vector<12x32xf32>
    %29 = tpu.matmul %26, %28, %cst_23 {dimension_numbers = #tpu.dot_dimension_numbers<[1], [0], [0], [1], [0, 0, 1, 1], [], []>} : vector<12x32xbf16>, vector<32x32xbf16>, vector<12x32xf32> -> vector<12x32xf32>
    %c0_24 = arith.constant 0 : index
    %c0_25 = arith.constant 0 : index
    %c0_26 = arith.constant 0 : index
    %30 = vector.load %arg10[%c0_24, %c0_25, %c0_26] : memref<2x1x32xf32, #tpu.memory_space<vmem>>, vector<1x1x32xf32>
    %31 = vector.shape_cast %30 : vector<1x1x32xf32> to vector<1x32xf32>
    %32 = vector.broadcast %31 : vector<1x32xf32> to vector<12x32xf32>
    %33 = arith.mulf %29, %32 : vector<12x32xf32>
    %c0_27 = arith.constant 0 : index
    %c0_28 = arith.constant 0 : index
    %c0_29 = arith.constant 0 : index
    %34 = vector.load %arg11[%c0_27, %c0_28, %c0_29] : memref<2x1x32xf32, #tpu.memory_space<vmem>>, vector<1x1x32xf32>
    %35 = vector.shape_cast %34 : vector<1x1x32xf32> to vector<1x32xf32>
    %36 = vector.broadcast %35 : vector<1x32xf32> to vector<12x32xf32>
    %37 = arith.addf %33, %36 : vector<12x32xf32>
    %38 = arith.addf %37, %11 : vector<12x32xf32>
    %39 = arith.truncf %38 : vector<12x32xf32> to vector<12x32xbf16>
    %c1 = arith.constant 1 : index
    %c0_30 = arith.constant 0 : index
    %c0_31 = arith.constant 0 : index
    %40 = vector.load %arg6[%c1, %c0_30, %c0_31] : memref<2x32x32xbf16, #tpu.memory_space<vmem>>, vector<1x32x32xbf16>
    %41 = vector.shape_cast %40 : vector<1x32x32xbf16> to vector<32x32xbf16>
    %cst_32 = arith.constant dense<0.000000e+00> : vector<12x32xf32>
    %42 = tpu.matmul %39, %41, %cst_32 {dimension_numbers = #tpu.dot_dimension_numbers<[1], [0], [0], [1], [0, 0, 1, 1], [], []>} : vector<12x32xbf16>, vector<32x32xbf16>, vector<12x32xf32> -> vector<12x32xf32>
    %c1_33 = arith.constant 1 : index
    %c0_34 = arith.constant 0 : index
    %c0_35 = arith.constant 0 : index
    %43 = vector.load %arg7[%c1_33, %c0_34, %c0_35] : memref<2x1x32xf32, #tpu.memory_space<vmem>>, vector<1x1x32xf32>
    %44 = vector.shape_cast %43 : vector<1x1x32xf32> to vector<1x32xf32>
    %45 = vector.broadcast %44 : vector<1x32xf32> to vector<12x32xf32>
    %46 = arith.mulf %42, %45 : vector<12x32xf32>
    %c1_36 = arith.constant 1 : index
    %c0_37 = arith.constant 0 : index
    %c0_38 = arith.constant 0 : index
    %47 = vector.load %arg8[%c1_36, %c0_37, %c0_38] : memref<2x1x32xf32, #tpu.memory_space<vmem>>, vector<1x1x32xf32>
    %48 = vector.shape_cast %47 : vector<1x1x32xf32> to vector<1x32xf32>
    %49 = vector.broadcast %48 : vector<1x32xf32> to vector<12x32xf32>
    %50 = arith.addf %46, %49 : vector<12x32xf32>
    %cst_39 = arith.constant 0.000000e+00 : f32
    %51 = vector.broadcast %cst_39 : f32 to vector<12x32xf32>
    %52 = arith.maximumf %50, %51 : vector<12x32xf32>
    %53 = arith.truncf %52 : vector<12x32xf32> to vector<12x32xbf16>
    %c1_40 = arith.constant 1 : index
    %c0_41 = arith.constant 0 : index
    %c0_42 = arith.constant 0 : index
    %54 = vector.load %arg9[%c1_40, %c0_41, %c0_42] : memref<2x32x32xbf16, #tpu.memory_space<vmem>>, vector<1x32x32xbf16>
    %55 = vector.shape_cast %54 : vector<1x32x32xbf16> to vector<32x32xbf16>
    %cst_43 = arith.constant dense<0.000000e+00> : vector<12x32xf32>
    %56 = tpu.matmul %53, %55, %cst_43 {dimension_numbers = #tpu.dot_dimension_numbers<[1], [0], [0], [1], [0, 0, 1, 1], [], []>} : vector<12x32xbf16>, vector<32x32xbf16>, vector<12x32xf32> -> vector<12x32xf32>
    %c1_44 = arith.constant 1 : index
    %c0_45 = arith.constant 0 : index
    %c0_46 = arith.constant 0 : index
    %57 = vector.load %arg10[%c1_44, %c0_45, %c0_46] : memref<2x1x32xf32, #tpu.memory_space<vmem>>, vector<1x1x32xf32>
    %58 = vector.shape_cast %57 : vector<1x1x32xf32> to vector<1x32xf32>
    %59 = vector.broadcast %58 : vector<1x32xf32> to vector<12x32xf32>
    %60 = arith.mulf %56, %59 : vector<12x32xf32>
    %c1_47 = arith.constant 1 : index
    %c0_48 = arith.constant 0 : index
    %c0_49 = arith.constant 0 : index
    %61 = vector.load %arg11[%c1_47, %c0_48, %c0_49] : memref<2x1x32xf32, #tpu.memory_space<vmem>>, vector<1x1x32xf32>
    %62 = vector.shape_cast %61 : vector<1x1x32xf32> to vector<1x32xf32>
    %63 = vector.broadcast %62 : vector<1x32xf32> to vector<12x32xf32>
    %64 = arith.addf %60, %63 : vector<12x32xf32>
    %65 = arith.addf %64, %38 : vector<12x32xf32>
    %66 = arith.truncf %65 : vector<12x32xf32> to vector<12x32xbf16>
    %c0_50 = arith.constant 0 : index
    %c0_51 = arith.constant 0 : index
    %67 = vector.load %arg12[%c0_50, %c0_51] : memref<32x16xbf16, #tpu.memory_space<vmem>>, vector<32x16xbf16>
    %cst_52 = arith.constant dense<0.000000e+00> : vector<12x16xf32>
    %68 = tpu.matmul %66, %67, %cst_52 {dimension_numbers = #tpu.dot_dimension_numbers<[1], [0], [0], [1], [0, 0, 1, 1], [], []>} : vector<12x32xbf16>, vector<32x16xbf16>, vector<12x16xf32> -> vector<12x16xf32>
    %c0_53 = arith.constant 0 : index
    %c0_54 = arith.constant 0 : index
    %69 = vector.load %arg13[%c0_53, %c0_54] : memref<1x16xf32, #tpu.memory_space<vmem>>, vector<1x16xf32>
    %70 = vector.broadcast %69 : vector<1x16xf32> to vector<12x16xf32>
    %71 = arith.addf %68, %70 : vector<12x16xf32>
    %c0_55 = arith.constant 0 : index
    %c0_56 = arith.constant 0 : index
    %c0_57 = arith.constant 0 : index
    %72 = vector.load %arg14[%c0_55, %c0_56, %c0_57] : memref<1x12x16xf32, #tpu.memory_space<vmem>>, vector<1x12x16xf32>
    %73 = vector.shape_cast %72 : vector<1x12x16xf32> to vector<12x16xf32>
    %74 = vector.shape_cast %71 : vector<12x16xf32> to vector<1x12x16xf32>
    tpu.vector_store %arg14[%c0_55, %c0_56, %c0_57], %74 {strides = array<i32>} : memref<1x12x16xf32, #tpu.memory_space<vmem>>, vector<1x12x16xf32>,
    return
  }
  func.func @transform_0(%arg0: i32, %arg1: i32) -> (i32, i32, i32) {
    %c0_i32 = arith.constant 0 : i32
    %c0_i32_0 = arith.constant 0 : i32
    return %arg0, %arg1, %c0_i32 : i32, i32, i32
  }
  func.func @transform_1(%arg0: i32, %arg1: i32) -> (i32, i32) {
    %c0_i32 = arith.constant 0 : i32
    %c0_i32_0 = arith.constant 0 : i32
    %c0_i32_1 = arith.constant 0 : i32
    return %c0_i32, %c0_i32_0 : i32, i32
  }
  func.func @transform_2(%arg0: i32, %arg1: i32) -> (i32, i32) {
    %c0_i32 = arith.constant 0 : i32
    %c0_i32_0 = arith.constant 0 : i32
    %c0_i32_1 = arith.constant 0 : i32
    return %c0_i32, %c0_i32_0 : i32, i32
  }
  func.func @transform_3(%arg0: i32, %arg1: i32) -> (i32, i32) {
    %c0_i32 = arith.constant 0 : i32
    %c0_i32_0 = arith.constant 0 : i32
    %c0_i32_1 = arith.constant 0 : i32
    return %c0_i32, %c0_i32_0 : i32, i32
  }
  func.func @transform_4(%arg0: i32, %arg1: i32) -> (i32, i32, i32) {
    %c0_i32 = arith.constant 0 : i32
    %c0_i32_0 = arith.constant 0 : i32
    %c0_i32_1 = arith.constant 0 : i32
    %c0_i32_2 = arith.constant 0 : i32
    return %c0_i32, %c0_i32_0, %c0_i32_1 : i32, i32, i32
  }
  func.func @transform_5(%arg0: i32, %arg1: i32) -> (i32, i32, i32) {
    %c0_i32 = arith.constant 0 : i32
    %c0_i32_0 = arith.constant 0 : i32
    %c0_i32_1 = arith.constant 0 : i32
    %c0_i32_2 = arith.constant 0 : i32
    return %c0_i32, %c0_i32_0, %c0_i32_1 : i32, i32, i32
  }
  func.func @transform_6(%arg0: i32, %arg1: i32) -> (i32, i32, i32) {
    %c0_i32 = arith.constant 0 : i32
    %c0_i32_0 = arith.constant 0 : i32
    %c0_i32_1 = arith.constant 0 : i32
    %c0_i32_2 = arith.constant 0 : i32
    return %c0_i32, %c0_i32_0, %c0_i32_1 : i32, i32, i32
  }
  func.func @transform_7(%arg0: i32, %arg1: i32) -> (i32, i32, i32) {
    %c0_i32 = arith.constant 0 : i32
    %c0_i32_0 = arith.constant 0 : i32
    %c0_i32_1 = arith.constant 0 : i32
    %c0_i32_2 = arith.constant 0 : i32
    return %c0_i32, %c0_i32_0, %c0_i32_1 : i32, i32, i32
  }
  func.func @transform_8(%arg0: i32, %arg1: i32) -> (i32, i32, i32) {
    %c0_i32 = arith.constant 0 : i32
    %c0_i32_0 = arith.constant 0 : i32
    %c0_i32_1 = arith.constant 0 : i32
    %c0_i32_2 = arith.constant 0 : i32
    return %c0_i32, %c0_i32_0, %c0_i32_1 : i32, i32, i32
  }
  func.func @transform_9(%arg0: i32, %arg1: i32) -> (i32, i32, i32) {
    %c0_i32 = arith.constant 0 : i32
    %c0_i32_0 = arith.constant 0 : i32
    %c0_i32_1 = arith.constant 0 : i32
    %c0_i32_2 = arith.constant 0 : i32
    return %c0_i32, %c0_i32_0, %c0_i32_1 : i32, i32, i32
  }
  func.func @transform_10(%arg0: i32, %arg1: i32) -> (i32, i32) {
    %c0_i32 = arith.constant 0 : i32
    %c0_i32_0 = arith.constant 0 : i32
    %c0_i32_1 = arith.constant 0 : i32
    return %c0_i32, %c0_i32_0 : i32, i32
  }
  func.func @transform_11(%arg0: i32, %arg1: i32) -> (i32, i32) {
    %c0_i32 = arith.constant 0 : i32
    %c0_i32_0 = arith.constant 0 : i32
    %c0_i32_1 = arith.constant 0 : i32
    return %c0_i32, %c0_i32_0 : i32, i32
  }
  func.func @transform_12(%arg0: i32, %arg1: i32) -> (i32, i32, i32) {
    %c0_i32 = arith.constant 0 : i32
    %c0_i32_0 = arith.constant 0 : i32
    return %arg0, %arg1, %c0_i32 : i32, i32, i32
  }
}

module attributes {stable_mosaic.version = 11 : i64} {
  func.func @stretch_box_kernel(%arg0: i32, %arg1: i32, %arg2: memref<1x16x16xf32, #tpu.memory_space<vmem>>, %arg3: memref<1x1x1x16xf32, #tpu.memory_space<vmem>>, %arg4: memref<1x1x1x16xf32, #tpu.memory_space<vmem>>, %arg5: memref<32x18xf32, #tpu.memory_space<vmem>>, %arg6: memref<1x32x16xf32, #tpu.memory_space<vmem>>) attributes {dimension_semantics = [#tpu.dimension_semantics<parallel>, #tpu.dimension_semantics<parallel>], iteration_bounds = array<i64: 2, 1>, scalar_prefetch = 0 : i64, scratch_operands = 0 : i64, tpu.core_type = #tpu.core_type<tc>, window_params = [{transform_indices = @transform_0, window_bounds = array<i64: 1, 16, 16>}, {transform_indices = @transform_1, window_bounds = array<i64: 1, 1, 1, 16>}, {transform_indices = @transform_2, window_bounds = array<i64: 1, 1, 1, 16>}, {pipeline_mode = #tpu.pipeline_mode<synchronous>, transform_indices = @transform_3, window_bounds = array<i64: 32, 18>}, {transform_indices = @transform_4, window_bounds = array<i64: 1, 32, 16>}]} {
    %c0 = arith.constant 0 : index
    %c0_0 = arith.constant 0 : index
    %c0_1 = arith.constant 0 : index
    %0 = vector.load %arg2[%c0, %c0_0, %c0_1] : memref<1x16x16xf32, #tpu.memory_space<vmem>>, vector<1x16x16xf32>
    %1 = vector.shape_cast %0 : vector<1x16x16xf32> to vector<16x16xf32>
    %c0_2 = arith.constant 0 : index
    %c0_3 = arith.constant 0 : index
    %c0_4 = arith.constant 0 : index
    %c0_5 = arith.constant 0 : index
    %2 = vector.load %arg3[%c0_2, %c0_3, %c0_4, %c0_5] : memref<1x1x1x16xf32, #tpu.memory_space<vmem>>, vector<1x1x1x16xf32>
    %3 = vector.shape_cast %2 : vector<1x1x1x16xf32> to vector<1x16xf32>
    %c0_6 = arith.constant 0 : index
    %c0_7 = arith.constant 0 : index
    %c0_8 = arith.constant 0 : index
    %c0_9 = arith.constant 0 : index
    %4 = vector.load %arg4[%c0_6, %c0_7, %c0_8, %c0_9] : memref<1x1x1x16xf32, #tpu.memory_space<vmem>>, vector<1x1x1x16xf32>
    %5 = vector.shape_cast %4 : vector<1x1x1x16xf32> to vector<1x16xf32>
    %6 = tpu.concatenate %3, %1, %5 in 0 : vector<1x16xf32>, vector<16x16xf32>, vector<1x16xf32> -> vector<18x16xf32>
    %c0_10 = arith.constant 0 : index
    %c0_11 = arith.constant 0 : index
    %7 = vector.load %arg5[%c0_10, %c0_11] : memref<32x18xf32, #tpu.memory_space<vmem>>, vector<32x18xf32>
    %cst = arith.constant dense<0.000000e+00> : vector<32x16xf32>
    %8 = tpu.matmul %7, %6, %cst {dimension_numbers = #tpu.dot_dimension_numbers<[1], [0], [0], [1], [0, 0, 1, 1], [], []>} : vector<32x18xf32>, vector<18x16xf32>, vector<32x16xf32> -> vector<32x16xf32>
    %c0_12 = arith.constant 0 : index
    %c0_13 = arith.constant 0 : index
    %c0_14 = arith.constant 0 : index
    %9 = vector.load %arg6[%c0_12, %c0_13, %c0_14] : memref<1x32x16xf32, #tpu.memory_space<vmem>>, vector<1x32x16xf32>
    %10 = vector.shape_cast %9 : vector<1x32x16xf32> to vector<32x16xf32>
    %11 = vector.shape_cast %8 : vector<32x16xf32> to vector<1x32x16xf32>
    tpu.vector_store %arg6[%c0_12, %c0_13, %c0_14], %11 {strides = array<i32>} : memref<1x32x16xf32, #tpu.memory_space<vmem>>, vector<1x32x16xf32>,
    return
  }
  func.func @transform_0(%arg0: i32, %arg1: i32) -> (i32, i32, i32) {
    %c0_i32 = arith.constant 0 : i32
    %c0_i32_0 = arith.constant 0 : i32
    return %arg0, %arg1, %c0_i32 : i32, i32, i32
  }
  func.func @transform_1(%arg0: i32, %arg1: i32) -> (i32, i32, i32, i32) {
    %c0_i32 = arith.constant 0 : i32
    %c0_i32_0 = arith.constant 0 : i32
    %c0_i32_1 = arith.constant 0 : i32
    return %arg0, %arg1, %c0_i32, %c0_i32_0 : i32, i32, i32, i32
  }
  func.func @transform_2(%arg0: i32, %arg1: i32) -> (i32, i32, i32, i32) {
    %c0_i32 = arith.constant 0 : i32
    %c0_i32_0 = arith.constant 0 : i32
    %c0_i32_1 = arith.constant 0 : i32
    return %arg0, %arg1, %c0_i32, %c0_i32_0 : i32, i32, i32, i32
  }
  func.func @transform_3(%arg0: i32, %arg1: i32) -> (i32, i32) {
    %c0_i32 = arith.constant 0 : i32
    %c0_i32_0 = arith.constant 0 : i32
    %c0_i32_1 = arith.constant 0 : i32
    return %c0_i32, %c0_i32_0 : i32, i32
  }
  func.func @transform_4(%arg0: i32, %arg1: i32) -> (i32, i32, i32) {
    %c0_i32 = arith.constant 0 : i32
    %c0_i32_0 = arith.constant 0 : i32
    return %arg0, %arg1, %c0_i32 : i32, i32, i32
  }
}

module attributes {stable_mosaic.version = 11 : i64} {
  func.func @stretch_box_kernel(%arg0: i32, %arg1: i32, %arg2: memref<1x32x16xf32, #tpu.memory_space<vmem>>, %arg3: memref<1x1x1x16xf32, #tpu.memory_space<vmem>>, %arg4: memref<1x1x1x16xf32, #tpu.memory_space<vmem>>, %arg5: memref<64x34xf32, #tpu.memory_space<vmem>>, %arg6: memref<1x64x16xf32, #tpu.memory_space<vmem>>) attributes {dimension_semantics = [#tpu.dimension_semantics<parallel>, #tpu.dimension_semantics<parallel>], iteration_bounds = array<i64: 2, 1>, scalar_prefetch = 0 : i64, scratch_operands = 0 : i64, tpu.core_type = #tpu.core_type<tc>, window_params = [{transform_indices = @transform_0, window_bounds = array<i64: 1, 32, 16>}, {transform_indices = @transform_1, window_bounds = array<i64: 1, 1, 1, 16>}, {transform_indices = @transform_2, window_bounds = array<i64: 1, 1, 1, 16>}, {pipeline_mode = #tpu.pipeline_mode<synchronous>, transform_indices = @transform_3, window_bounds = array<i64: 64, 34>}, {transform_indices = @transform_4, window_bounds = array<i64: 1, 64, 16>}]} {
    %c0 = arith.constant 0 : index
    %c0_0 = arith.constant 0 : index
    %c0_1 = arith.constant 0 : index
    %0 = vector.load %arg2[%c0, %c0_0, %c0_1] : memref<1x32x16xf32, #tpu.memory_space<vmem>>, vector<1x32x16xf32>
    %1 = vector.shape_cast %0 : vector<1x32x16xf32> to vector<32x16xf32>
    %c0_2 = arith.constant 0 : index
    %c0_3 = arith.constant 0 : index
    %c0_4 = arith.constant 0 : index
    %c0_5 = arith.constant 0 : index
    %2 = vector.load %arg3[%c0_2, %c0_3, %c0_4, %c0_5] : memref<1x1x1x16xf32, #tpu.memory_space<vmem>>, vector<1x1x1x16xf32>
    %3 = vector.shape_cast %2 : vector<1x1x1x16xf32> to vector<1x16xf32>
    %c0_6 = arith.constant 0 : index
    %c0_7 = arith.constant 0 : index
    %c0_8 = arith.constant 0 : index
    %c0_9 = arith.constant 0 : index
    %4 = vector.load %arg4[%c0_6, %c0_7, %c0_8, %c0_9] : memref<1x1x1x16xf32, #tpu.memory_space<vmem>>, vector<1x1x1x16xf32>
    %5 = vector.shape_cast %4 : vector<1x1x1x16xf32> to vector<1x16xf32>
    %6 = tpu.concatenate %3, %1, %5 in 0 : vector<1x16xf32>, vector<32x16xf32>, vector<1x16xf32> -> vector<34x16xf32>
    %c0_10 = arith.constant 0 : index
    %c0_11 = arith.constant 0 : index
    %7 = vector.load %arg5[%c0_10, %c0_11] : memref<64x34xf32, #tpu.memory_space<vmem>>, vector<64x34xf32>
    %cst = arith.constant dense<0.000000e+00> : vector<64x16xf32>
    %8 = tpu.matmul %7, %6, %cst {dimension_numbers = #tpu.dot_dimension_numbers<[1], [0], [0], [1], [0, 0, 1, 1], [], []>} : vector<64x34xf32>, vector<34x16xf32>, vector<64x16xf32> -> vector<64x16xf32>
    %c0_12 = arith.constant 0 : index
    %c0_13 = arith.constant 0 : index
    %c0_14 = arith.constant 0 : index
    %9 = vector.load %arg6[%c0_12, %c0_13, %c0_14] : memref<1x64x16xf32, #tpu.memory_space<vmem>>, vector<1x64x16xf32>
    %10 = vector.shape_cast %9 : vector<1x64x16xf32> to vector<64x16xf32>
    %11 = vector.shape_cast %8 : vector<64x16xf32> to vector<1x64x16xf32>
    tpu.vector_store %arg6[%c0_12, %c0_13, %c0_14], %11 {strides = array<i32>} : memref<1x64x16xf32, #tpu.memory_space<vmem>>, vector<1x64x16xf32>,
    return
  }
  func.func @transform_0(%arg0: i32, %arg1: i32) -> (i32, i32, i32) {
    %c0_i32 = arith.constant 0 : i32
    %c0_i32_0 = arith.constant 0 : i32
    return %arg0, %arg1, %c0_i32 : i32, i32, i32
  }
  func.func @transform_1(%arg0: i32, %arg1: i32) -> (i32, i32, i32, i32) {
    %c0_i32 = arith.constant 0 : i32
    %c0_i32_0 = arith.constant 0 : i32
    %c0_i32_1 = arith.constant 0 : i32
    return %arg0, %arg1, %c0_i32, %c0_i32_0 : i32, i32, i32, i32
  }
  func.func @transform_2(%arg0: i32, %arg1: i32) -> (i32, i32, i32, i32) {
    %c0_i32 = arith.constant 0 : i32
    %c0_i32_0 = arith.constant 0 : i32
    %c0_i32_1 = arith.constant 0 : i32
    return %arg0, %arg1, %c0_i32, %c0_i32_0 : i32, i32, i32, i32
  }
  func.func @transform_3(%arg0: i32, %arg1: i32) -> (i32, i32) {
    %c0_i32 = arith.constant 0 : i32
    %c0_i32_0 = arith.constant 0 : i32
    %c0_i32_1 = arith.constant 0 : i32
    return %c0_i32, %c0_i32_0 : i32, i32
  }
  func.func @transform_4(%arg0: i32, %arg1: i32) -> (i32, i32, i32) {
    %c0_i32 = arith.constant 0 : i32
    %c0_i32_0 = arith.constant 0 : i32
    return %arg0, %arg1, %c0_i32 : i32, i32, i32
  }
}

</mosaic_0001>

<llo_original>
// kernel: upsample_network_forward.4
$region0: #{upsample_network_forward.4}
  #allocation0 [shape = 'u32[]', space=smem, size = 0x4, offset = 0x4, fixed_abs, tag = 'smem constant byte address 0x4 - core index']
  #allocation1 [shape = 'u32[144,128]{1,0:T(1,128)}', space=vmem, size = 0x12000, scoped, tag = 'internal scratch']
  %s0 = inlined_call_operand.vmem [shape: f32[2,16,16], index: 0, kind: input, shape index: {}]
  %s1 = inlined_call_operand.vmem [shape: f32[2,1,1,16], index: 1, kind: input, shape index: {}, may-alias: {1,2}]
  %s2 = inlined_call_operand.vmem [shape: f32[2,1,1,16], index: 2, kind: input, shape index: {}, may-alias: {1,2}]
  %s3 = inlined_call_operand.vmem [shape: f32[32,18], index: 3, kind: input, shape index: {}]
  %s4 = inlined_call_operand.vmem [shape: f32[2,32,16], index: 4, kind: output, shape index: {}]
  %s5 = sld [smem:[#allocation0]]
  $region49: #{upsample_network_forward.4} parent=0
    _
  %s7 = ssub.s32 1, %s5
  %s8 = scalar_select 0, %s7, %s5
  loop: start=0, step=1, limit=4
  $region2: #{upsample_network_forward.4} parent=0 // loop_pre_header
    _
  $region3: #{upsample_network_forward.4} parent=0 // loop_header
    %s10 = sphi 0, %s14
    %p11 = scmp.ge.s32.totalorder %s10, 4
    %s17 = sphi 0, %s29
    %s18 = sphi 0, %s25
    %s19 = sphi 0, %s17
    %s20 = sphi 0, %s18
    %s21 = sphi 0, %s19
    %s22 = sphi 0, %s20
    %s34 = sphi 0, %s36
    %s37 = sphi 0, %s34
    %s38 = sphi 0, %s37
    %s54 = sphi 0, %s38
    %s62 = sphi 0, %s64
    %s65 = sphi 0, %s62
    %s66 = sphi 0, %s65
    %s82 = sphi 0, %s66
    %s90 = sphi 0, %s92
    %s93 = sphi 0, %s90
    %s94 = sphi 0, %s93
    %s110 = sphi 0, %s94
    %s114 = sphi 0, %s114
    %s116 = sphi 0, %s114
    %s117 = sphi 0, %s116
    %s131 = sphi 0, %s117
    %s139 = sphi 0, %s141
    %s142 = sphi 0, %s139
    %s143 = sphi 0, %s142
    %s159 = sphi 0, %s143
  $region4: #{upsample_network_forward.4} parent=0 // loop_header_branch
    %13 = sbr.rel (%p11) target = $region8
  $region5: #{upsample_network_forward.4} parent=0 // loop_body
    %s15 = ssub.s32 %s10, 1
    %s16 = ssub.s32 %s10, 2
    %s23 = sadd.s32 1, %s18
    %p24 = scmp.ge.s32.totalorder %s23, 1
    %s25 = scalar_select %p24, 0, %s23
    %s26 = sadd.s32 1, %s17
    %s27 = scalar_select %p24, %s26, %s17
    %p28 = scmp.ge.s32.totalorder %s27, 2
    %s29 = scalar_select %p28, 0, %s27
    %s30 = ssub.s32 %s17, %s29
    %s31 = ssub.s32 %s18, %s25
    %s32 = sor.u32 %s30, %s31
    %p33 = scmp.eq.s32.totalorder %s32, 0
    %s35 = sadd.s32 %s34, 1
    %s36 = scalar_select %p33, %s34, %s35
    %p39 = pneg %p33
    %p40 = scmp.eq.s32.totalorder %s10, 1
    %p41 = por %p39, %p40
    %p42 = scmp.ne.s32.totalorder %s34, %s37
    %p43 = scmp.eq.s32.totalorder %s10, 0
    %p44 = por %p42, %p43
    %p45 = scmp.ne.s32.totalorder %s34, %s37
    %p46 = scmp.eq.s32.totalorder %s15, 1
    %p47 = por %p45, %p46
    %p48 = scmp.ne.s32.totalorder %s37, %s38
    %p49 = scmp.eq.s32.totalorder %s15, 0
    %p50 = por %p48, %p49
    %p51 = scmp.ne.s32.totalorder %s37, %s38
    %p52 = scmp.eq.s32.totalorder %s16, 1
    %p53 = por %p51, %p52
    %p55 = scmp.ne.s32.totalorder %s38, %s54
    %p56 = scmp.eq.s32.totalorder %s16, 0
    %p57 = por %p55, %p56
    %s58 = ssub.s32 %s17, %s29
    %s59 = ssub.s32 %s18, %s25
    %s60 = sor.u32 %s58, %s59
    %p61 = scmp.eq.s32.totalorder %s60, 0
    %s63 = sadd.s32 %s62, 1
    %s64 = scalar_select %p61, %s62, %s63
    %p67 = pneg %p61
    %p68 = scmp.eq.s32.totalorder %s10, 1
    %p69 = por %p67, %p68
    %p70 = scmp.ne.s32.totalorder %s62, %s65
    %p71 = scmp.eq.s32.totalorder %s10, 0
    %p72 = por %p70, %p71
    %p73 = scmp.ne.s32.totalorder %s62, %s65
    %p74 = scmp.eq.s32.totalorder %s15, 1
    %p75 = por %p73, %p74
    %p76 = scmp.ne.s32.totalorder %s65, %s66
    %p77 = scmp.eq.s32.totalorder %s15, 0
    %p78 = por %p76, %p77
    %p79 = scmp.ne.s32.totalorder %s65, %s66
    %p80 = scmp.eq.s32.totalorder %s16, 1
    %p81 = por %p79, %p80
    %p83 = scmp.ne.s32.totalorder %s66, %s82
    %p84 = scmp.eq.s32.totalorder %s16, 0
    %p85 = por %p83, %p84
    %s86 = ssub.s32 %s17, %s29
    %s87 = ssub.s32 %s18, %s25
    %s88 = sor.u32 %s86, %s87
    %p89 = scmp.eq.s32.totalorder %s88, 0
    %s91 = sadd.s32 %s90, 1
    %s92 = scalar_select %p89, %s90, %s91
    %p95 = pneg %p89
    %p96 = scmp.eq.s32.totalorder %s10, 1
    %p97 = por %p95, %p96
    %p98 = scmp.ne.s32.totalorder %s90, %s93
    %p99 = scmp.eq.s32.totalorder %s10, 0
    %p100 = por %p98, %p99
    %p101 = scmp.ne.s32.totalorder %s90, %s93
    %p102 = scmp.eq.s32.totalorder %s15, 1
    %p103 = por %p101, %p102
    %p104 = scmp.ne.s32.totalorder %s93, %s94
    %p105 = scmp.eq.s32.totalorder %s15, 0
    %p106 = por %p104, %p105
    %p107 = scmp.ne.s32.totalorder %s93, %s94
    %p108 = scmp.eq.s32.totalorder %s16, 1
    %p109 = por %p107, %p108
    %p111 = scmp.ne.s32.totalorder %s94, %s110
    %p112 = scmp.eq.s32.totalorder %s16, 0
    %p113 = por %p111, %p112
    %s115 = sadd.s32 %s114, 1
    %p118 = scmp.eq.s32.totalorder %s10, 1
    %p119 = scmp.ne.s32.totalorder %s114, %s116
    %p120 = scmp.eq.s32.totalorder %s10, 0
    %p121 = por %p119, %p120
    %p122 = scmp.ne.s32.totalorder %s114, %s116
    %p123 = scmp.eq.s32.totalorder %s15, 1
    %p124 = por %p122, %p123
    %p125 = scmp.ne.s32.totalorder %s116, %s117
    %p126 = scmp.eq.s32.totalorder %s15, 0
    %p127 = por %p125, %p126
    %p128 = scmp.ne.s32.totalorder %s116, %s117
    %p129 = scmp.eq.s32.totalorder %s16, 1
    %p130 = por %p128, %p129
    %p132 = scmp.ne.s32.totalorder %s117, %s131
    %p133 = scmp.eq.s32.totalorder %s16, 0
    %p134 = por %p132, %p133
    %s135 = ssub.s32 %s17, %s29
    %s136 = ssub.s32 %s18, %s25
    %s137 = sor.u32 %s135, %s136
    %p138 = scmp.eq.s32.totalorder %s137, 0
    %s140 = sadd.s32 %s139, 1
    %s141 = scalar_select %p138, %s139, %s140
    %p144 = pneg %p138
    %p145 = scmp.eq.s32.totalorder %s10, 1
    %p146 = por %p144, %p145
    %p147 = scmp.ne.s32.totalorder %s139, %s142
    %p148 = scmp.eq.s32.totalorder %s10, 0
    %p149 = por %p147, %p148
    %p150 = scmp.ne.s32.totalorder %s139, %s142
    %p151 = scmp.eq.s32.totalorder %s15, 1
    %p152 = por %p150, %p151
    %p153 = scmp.ne.s32.totalorder %s142, %s143
    %p154 = scmp.eq.s32.totalorder %s15, 0
    %p155 = por %p153, %p154
    %p156 = scmp.ne.s32.totalorder %s142, %s143
    %p157 = scmp.eq.s32.totalorder %s16, 1
    %p158 = por %p156, %p157
    %p160 = scmp.ne.s32.totalorder %s143, %s159
    %p161 = scmp.eq.s32.totalorder %s16, 0
    %p162 = por %p160, %p161
    %p163 = scmp.le.s32.totalorder 1, %s10
    %p164 = scmp.lt.s32.totalorder %s10, 3
    %p165 = pnand %p163, %p164
    %p166 = pneg %p165
    // Predicated region
    $region9: #{upsample_network_forward.4} parent=5 // pred_check
      _
    $region10: #{upsample_network_forward.4} parent=5 // pred_check_branch
      %168 = sbr.rel (%p165) target = $region12
    $region11: #{upsample_network_forward.4} parent=5 // pred_region
      %s169 = ssub.s32 %s10, 1
      // Predicated region
      $region13: #{upsample_network_forward.4} parent=11 // pred_check
        %p170 = pneg %p127
      $region14: #{upsample_network_forward.4} parent=11 // pred_check_branch
        %172 = sbr.rel (%p170) target = $region16
      $region15: #{upsample_network_forward.4} parent=11 // pred_region
        _
      $region16: #{upsample_network_forward.4} parent=11 // pred_fallthru
        _
    $region12: #{upsample_network_forward.4} parent=5 // pred_fallthru
      _
    %p173 = scmp.lt.s32.totalorder %s10, 2
    // Predicated region
    $region17: #{upsample_network_forward.4} parent=5 // pred_check
      %p174 = pneg %p173
    $region18: #{upsample_network_forward.4} parent=5 // pred_check_branch
      %176 = sbr.rel (%p174) target = $region20
    $region19: #{upsample_network_forward.4} parent=5 // pred_region
      // Predicated region
      $region21: #{upsample_network_forward.4} parent=19 // pred_check
        %p177 = pneg %p44
      $region22: #{upsample_network_forward.4} parent=19 // pred_check_branch
        %179 = sbr.rel (%p177) target = $region24
      $region23: #{upsample_network_forward.4} parent=19 // pred_region
        %s180 = smul.u32 2, %s18
        %p181 = scmp.lt.s32.totalorder %s17, 1
        %s182 = scalar_select %p181, %s17, 1
        %p183 = scmp.lt.s32.totalorder %s180, 1
        %s184 = scalar_select %p183, %s180, 1
        %s185 = smul.addr %s182, 2
        %s186 = sadd.s32 %s184, %s185
        %s187 = smul.addr %s186, 8
        %s188 = scalar_lea.vmem %s0, %s187
        %s189 = smul.u32 2, %s18
      $region24: #{upsample_network_forward.4} parent=19 // pred_fallthru
        _
      // Predicated region
      $region25: #{upsample_network_forward.4} parent=19 // pred_check
        %p190 = pneg %p72
      $region26: #{upsample_network_forward.4} parent=19 // pred_check_branch
        %192 = sbr.rel (%p190) target = $region28
      $region27: #{upsample_network_forward.4} parent=19 // pred_region
        %p193 = scmp.lt.s32.totalorder %s17, 1
        %s194 = scalar_select %p193, %s17, 1
        %p195 = scmp.lt.s32.totalorder %s18, 0
        %s196 = scalar_select %p195, %s18, 0
        %s197 = sadd.s32 %s196, %s194
        %s198 = scalar_lea.vmem %s1, %s197
      $region28: #{upsample_network_forward.4} parent=19 // pred_fallthru
        _
      // Predicated region
      $region29: #{upsample_network_forward.4} parent=19 // pred_check
        %p199 = pneg %p100
      $region30: #{upsample_network_forward.4} parent=19 // pred_check_branch
        %201 = sbr.rel (%p199) target = $region32
      $region31: #{upsample_network_forward.4} parent=19 // pred_region
        %p202 = scmp.lt.s32.totalorder %s17, 1
        %s203 = scalar_select %p202, %s17, 1
        %p204 = scmp.lt.s32.totalorder %s18, 0
        %s205 = scalar_select %p204, %s18, 0
        %s206 = sadd.s32 %s205, %s203
        %s207 = scalar_lea.vmem %s2, %s206
      $region32: #{upsample_network_forward.4} parent=19 // pred_fallthru
        _
    $region20: #{upsample_network_forward.4} parent=5 // pred_fallthru
      _
    %p208 = scmp.le.s32.totalorder 1, %s10
    %p209 = scmp.lt.s32.totalorder %s10, 3
    %p210 = pnand %p208, %p209
    %p211 = pneg %p210
    // Predicated region
    $region33: #{upsample_network_forward.4} parent=5 // pred_check
      _
    $region34: #{upsample_network_forward.4} parent=5 // pred_check_branch
      %213 = sbr.rel (%p210) target = $region36
    $region35: #{upsample_network_forward.4} parent=5 // pred_region
      %s214 = ssub.s32 %s10, 1
      %s215 = smul.u32 2, %s20
      %p216 = scmp.lt.s32.totalorder %s19, 1
      %s217 = scalar_select %p216, %s19, 1
      %p218 = scmp.lt.s32.totalorder %s215, 1
      %s219 = scalar_select %p218, %s215, 1
      %s220 = smul.addr %s217, 2
      %s221 = sadd.s32 %s219, %s220
      %s222 = smul.addr %s221, 8
      %s223 = scalar_lea.vmem %s0, %s222
      %p224 = pneg %p50
      %p225 = pneg %p47
      %p226 = scmp.lt.s32.totalorder %s19, 1
      %s227 = scalar_select %p226, %s19, 1
      %p228 = scmp.lt.s32.totalorder %s20, 0
      %s229 = scalar_select %p228, %s20, 0
      %s230 = sadd.s32 %s229, %s227
      %s231 = scalar_lea.vmem %s1, %s230
      %p232 = pneg %p78
      %p233 = pneg %p75
      %p234 = scmp.lt.s32.totalorder %s19, 1
      %s235 = scalar_select %p234, %s19, 1
      %p236 = scmp.lt.s32.totalorder %s20, 0
      %s237 = scalar_select %p236, %s20, 0
      %s238 = sadd.s32 %s237, %s235
      %s239 = scalar_lea.vmem %s2, %s238
      %p240 = pneg %p106
      %p241 = pneg %p103
      %p242 = pneg %p127
      %p243 = pneg %p124
      %p244 = pneg %p155
      %p245 = pneg %p152
      %s246 = smul.u32 4, %s20
      %p247 = scmp.lt.s32.totalorder %s19, 1
      %s248 = scalar_select %p247, %s19, 1
      %p249 = scmp.lt.s32.totalorder %s246, 3
      %s250 = scalar_select %p249, %s246, 3
      %s251 = smul.addr %s248, 4
      %s252 = sadd.s32 %s250, %s251
      %s253 = smul.addr %s252, 8
      %s254 = scalar_lea.vmem %s4, %s253
      %s255 = smul.u32 2, %s20
      %p256 = scmp.lt.s32.totalorder %s19, 1
      %s257 = scalar_select %p256, %s19, 1
      %p258 = scmp.lt.s32.totalorder %s255, 1
      %s259 = scalar_select %p258, %s255, 1
      %s260 = smul.addr %s257, 2
      %s261 = sadd.s32 %s259, %s260
      %s262 = smul.addr %s261, 8
      %s263 = scalar_lea.vmem %s0, %s262
      %s264 = smul.u32 2, %s20
      %p265 = scmp.lt.s32.totalorder %s19, 1
      %s266 = scalar_select %p265, %s19, 1
      %p267 = scmp.lt.s32.totalorder %s20, 0
      %s268 = scalar_select %p267, %s20, 0
      %s269 = sadd.s32 %s268, %s266
      %s270 = scalar_lea.vmem %s1, %s269
      %p271 = scmp.lt.s32.totalorder %s19, 1
      %s272 = scalar_select %p271, %s19, 1
      %p273 = scmp.lt.s32.totalorder %s20, 0
      %s274 = scalar_select %p273, %s20, 0
      %s275 = sadd.s32 %s274, %s272
      %s276 = scalar_lea.vmem %s2, %s275
      %s277 = smul.u32 4, %s20
      %p278 = scmp.lt.s32.totalorder %s19, 1
      %s279 = scalar_select %p278, %s19, 1
      %p280 = scmp.lt.s32.totalorder %s277, 3
      %s281 = scalar_select %p280, %s277, 3
      %s282 = smul.addr %s279, 4
      %s283 = sadd.s32 %s281, %s282
      %s284 = smul.addr %s283, 8
      %s285 = scalar_lea.vmem %s4, %s284
      %s286 = smul.u32 4, %s20
      %v287 = vld [vmem:[%s263] sm:$0xff]
      %v288 = vld [vmem:[%s263 + $0x8] sm:$0xff]
      %v289 = vld [vmem:[%s270] sm:$0x1]
      %v290 = vld [vmem:[%s276] sm:$0x1]
      %vm293 = vcmask 1040384
      %v294 = vrot.slane %v287, 7
      %v295 = vrot.slane %v288, 7
      %v296 = vsel %vm293, %v294, %v295
      %v301 = vlaneseq
      %v302 = vshrl.u32 %v301, 7
      %v303 = vsub.s32 0, %v302
      %v304 = vrot.slane %v290, %v303
      %v306 = vsel %vm293, %v289, %v294
      %v307 = vsel %vm293, %v295, %v304
      %v308 = vld [vmem:[%s3] sm:$0xff]
      %v309 = vld [vmem:[%s3 + $0x8] sm:$0xff]
      %v310 = vld [vmem:[%s3 + $0x10] sm:$0xff]
      %v311 = vld [vmem:[%s3 + $0x18] sm:$0xff]
      %vm312 = vcmask 146432
      %v314 = vsel %vm312, %v308, 0
      %v317 = vsel %vm312, %v309, 0
      %v320 = vsel %vm312, %v310, 0
      %v323 = vsel %vm312, %v311, 0
      %vm325 = vcmask 1041408
      %v327 = vsel %vm325, %v307, 0
      %329 = vmatprep.subr.mxu0 0.0
      %330 = vmatpush1.msra.mxu0 0.0
      %331 = vmatprep.subr.mxu0 0.0
      %332 = vmatpush1.msra.mxu0 0.0
      %333 = vmatprep.subr.mxu0 0.0
      %334 = vmatpush1.msra.mxu0 0.0
      %335 = vmatprep.subr.mxu0 0.0
      %336 = vmatpush1.msra.mxu0 0.0
      %337 = vmatprep.subr.mxu0 0.0
      %338 = vmatpush1.msra.mxu0 0.0
      %339 = vmatprep.subr.mxu0 0.0
      %340 = vmatpush1.msra.mxu0 0.0
      %341 = vmatprep.subr.mxu0 0.0
      %342 = vmatpush1.msra.mxu0 0.0
      %343 = vmatprep.subr.mxu0 0.0
      %344 = vmatpush1.msra.mxu0 0.0
      %345 = vmatprep.subr.mxu0 0.0
      %346 = vmatpush1.msra.mxu0 0.0
      %347 = vmatprep.subr.mxu0 0.0
      %348 = vmatpush1.msra.mxu0 0.0
      %349 = vmatprep.subr.mxu0 0.0
      %350 = vmatpush1.msra.mxu0 0.0
      %351 = vmatprep.subr.mxu0 0.0
      %352 = vmatpush1.msra.mxu0 0.0
      %353 = vmatprep.subr.mxu0 0.0
      %354 = vmatpush1.msra.mxu0 0.0
      %355 = vmatprep.subr.mxu0 0.0
      %356 = vmatpush1.msra.mxu0 %v327
      %357 = vmatprep.subr.mxu0 0.0
      %358 = vmatpush1.msra.mxu0 %v296
      %359 = vmatprep.subr.mxu0 0.0
      %360 = vmatpush1.msra.mxu0 %v306
      %361 = vmatprep.subr.mxu0 0.0
      %362 = vmatpush2.msra.mxu0 0.0
      %363 = vmatprep.subr.mxu0 0.0
      %364 = vmatpush2.msra.mxu0 0.0
      %365 = vmatprep.subr.mxu0 0.0
      %366 = vmatpush2.msra.mxu0 0.0
      %367 = vmatprep.subr.mxu0 0.0
      %368 = vmatpush2.msra.mxu0 0.0
      %369 = vmatprep.subr.mxu0 0.0
      %370 = vmatpush2.msra.mxu0 0.0
      %371 = vmatprep.subr.mxu0 0.0
      %372 = vmatpush2.msra.mxu0 0.0
      %373 = vmatprep.subr.mxu0 0.0
      %374 = vmatpush2.msra.mxu0 0.0
      %375 = vmatprep.subr.mxu0 0.0
      %376 = vmatpush2.msra.mxu0 0.0
      %377 = vmatprep.subr.mxu0 0.0
      %378 = vmatpush2.msra.mxu0 0.0
      %379 = vmatprep.subr.mxu0 0.0
      %380 = vmatpush2.msra.mxu0 0.0
      %381 = vmatprep.subr.mxu0 0.0
      %382 = vmatpush2.msra.mxu0 0.0
      %383 = vmatprep.subr.mxu0 0.0
      %384 = vmatpush2.msra.mxu0 0.0
      %385 = vmatprep.subr.mxu0 0.0
      %386 = vmatpush2.msra.mxu0 0.0
      %387 = vmatprep.subr.mxu0 0.0
      %388 = vmatpush2.msra.mxu0 0.0
      %389 = vmatprep.subr.mxu0 0.0
      %390 = vmatpush2.msra.mxu0 0.0
      %391 = vmatprep.subr.mxu0 0.0
      %392 = vmatpush2.msra.mxu0 0.0
      %393 = vmatprep.mubr.f32.mxu0 0.0
      %394 = vmatmul.mubr.f32.gmra.mxu0 %v314
      %v395 = vpop.f32.mrf.mxu0
      %v396 = vadd.f32 0.0, %v395
      %v397 = vpop.f32.mrf.mxu0
      %398 = vmatprep.mubr.f32.mxu0 0.0
      %399 = vmatmul.mubr.f32.gmra.mxu0 %v317
      %v400 = vpop.f32.mrf.mxu0
      %v401 = vadd.f32 0.0, %v400
      %v402 = vpop.f32.mrf.mxu0
      %403 = vmatprep.mubr.f32.mxu0 0.0
      %404 = vmatmul.mubr.f32.gmra.mxu0 %v320
      %v405 = vpop.f32.mrf.mxu0
      %v406 = vadd.f32 0.0, %v405
      %v407 = vpop.f32.mrf.mxu0
      %408 = vmatprep.mubr.f32.mxu0 0.0
      %409 = vmatmul.mubr.f32.gmra.mxu0 %v323
      %v410 = vpop.f32.mrf.mxu0
      %v411 = vadd.f32 0.0, %v410
      %v412 = vpop.f32.mrf.mxu0
      %413 = vdwg.mxu0
      %vm414 = vcmask 130048
      %415 = vst.msk [vmem:[%s285] sm:$0xff] %vm414, %v396
      %416 = vst.msk [vmem:[%s285 + $0x8] sm:$0xff] %vm414, %v401
      %417 = vst.msk [vmem:[%s285 + $0x10] sm:$0xff] %vm414, %v406
      %418 = vst.msk [vmem:[%s285 + $0x18] sm:$0xff] %vm414, %v411
      %s419 = smul.u32 4, %s20
      %p420 = scmp.lt.s32.totalorder %s19, 1
      %s421 = scalar_select %p420, %s19, 1
      %p422 = scmp.lt.s32.totalorder %s419, 3
      %s423 = scalar_select %p422, %s419, 3
      %s424 = smul.addr %s421, 4
      %s425 = sadd.s32 %s423, %s424
      %s426 = smul.addr %s425, 8
      %s427 = scalar_lea.vmem %s4, %s426
      // Predicated region
      $region37: #{upsample_network_forward.4} parent=35 // pred_check
        %p428 = pneg %p152
      $region38: #{upsample_network_forward.4} parent=35 // pred_check_branch
        %430 = sbr.rel (%p428) target = $region40
      $region39: #{upsample_network_forward.4} parent=35 // pred_region
        %s431 = smul.u32 4, %s20
      $region40: #{upsample_network_forward.4} parent=35 // pred_fallthru
        _
    $region36: #{upsample_network_forward.4} parent=5 // pred_fallthru
      _
    %p432 = scmp.le.s32.totalorder 2, %s10
    // Predicated region
    $region41: #{upsample_network_forward.4} parent=5 // pred_check
      %p433 = pneg %p432
    $region42: #{upsample_network_forward.4} parent=5 // pred_check_branch
      %435 = sbr.rel (%p433) target = $region44
    $region43: #{upsample_network_forward.4} parent=5 // pred_region
      %s436 = ssub.s32 %s10, 2
      // Predicated region
      $region45: #{upsample_network_forward.4} parent=43 // pred_check
        %p437 = pneg %p158
      $region46: #{upsample_network_forward.4} parent=43 // pred_check_branch
        %439 = sbr.rel (%p437) target = $region48
      $region47: #{upsample_network_forward.4} parent=43 // pred_region
        %s440 = smul.u32 4, %s22
        %p441 = scmp.lt.s32.totalorder %s21, 1
        %s442 = scalar_select %p441, %s21, 1
        %p443 = scmp.lt.s32.totalorder %s440, 3
        %s444 = scalar_select %p443, %s440, 3
        %s445 = smul.addr %s442, 4
        %s446 = sadd.s32 %s444, %s445
        %s447 = smul.addr %s446, 8
        %s448 = scalar_lea.vmem %s4, %s447
      $region48: #{upsample_network_forward.4} parent=43 // pred_fallthru
        _
    $region44: #{upsample_network_forward.4} parent=5 // pred_fallthru
      _
  $region6: #{upsample_network_forward.4} parent=0 // loop_footer
    %s14 = sadd.s32 1, %s10
  $region7: #{upsample_network_forward.4} parent=0 // loop_footer_branch
    %9 = sbr.rel target = $region3
  $region8: #{upsample_network_forward.4} parent=0 // loop_exit
    _

// kernel: upsample_network_forward.5
$region0: #{upsample_network_forward.5}
  #allocation0 [shape = 'u32[]', space=smem, size = 0x4, offset = 0x4, fixed_abs, tag = 'smem constant byte address 0x4 - core index']
  #allocation1 [shape = 'u32[144,128]{1,0:T(1,128)}', space=vmem, size = 0x12000, scoped, tag = 'internal scratch']
  %s0 = inlined_call_operand.vmem [shape: f32[2,32,16], index: 0, kind: input, shape index: {}]
  %s1 = inlined_call_operand.vmem [shape: f32[2,1,1,16], index: 1, kind: input, shape index: {}, may-alias: {1,2}]
  %s2 = inlined_call_operand.vmem [shape: f32[2,1,1,16], index: 2, kind: input, shape index: {}, may-alias: {1,2}]
  %s3 = inlined_call_operand.vmem [shape: f32[64,34], index: 3, kind: input, shape index: {}]
  %s4 = inlined_call_operand.vmem [shape: f32[2,64,16], index: 4, kind: output, shape index: {}]
  %s5 = sld [smem:[#allocation0]]
  $region49: #{upsample_network_forward.5} parent=0
    _
  %s7 = ssub.s32 1, %s5
  %s8 = scalar_select 0, %s7, %s5
  loop: start=0, step=1, limit=4
  $region2: #{upsample_network_forward.5} parent=0 // loop_pre_header
    _
  $region3: #{upsample_network_forward.5} parent=0 // loop_header
    %s10 = sphi 0, %s14
    %p11 = scmp.ge.s32.totalorder %s10, 4
    %s17 = sphi 0, %s29
    %s18 = sphi 0, %s25
    %s19 = sphi 0, %s17
    %s20 = sphi 0, %s18
    %s21 = sphi 0, %s19
    %s22 = sphi 0, %s20
    %s34 = sphi 0, %s36
    %s37 = sphi 0, %s34
    %s38 = sphi 0, %s37
    %s54 = sphi 0, %s38
    %s62 = sphi 0, %s64
    %s65 = sphi 0, %s62
    %s66 = sphi 0, %s65
    %s82 = sphi 0, %s66
    %s90 = sphi 0, %s92
    %s93 = sphi 0, %s90
    %s94 = sphi 0, %s93
    %s110 = sphi 0, %s94
    %s114 = sphi 0, %s114
    %s116 = sphi 0, %s114
    %s117 = sphi 0, %s116
    %s131 = sphi 0, %s117
    %s139 = sphi 0, %s141
    %s142 = sphi 0, %s139
    %s143 = sphi 0, %s142
    %s159 = sphi 0, %s143
  $region4: #{upsample_network_forward.5} parent=0 // loop_header_branch
    %13 = sbr.rel (%p11) target = $region8
  $region5: #{upsample_network_forward.5} parent=0 // loop_body
    %s15 = ssub.s32 %s10, 1
    %s16 = ssub.s32 %s10, 2
    %s23 = sadd.s32 1, %s18
    %p24 = scmp.ge.s32.totalorder %s23, 1
    %s25 = scalar_select %p24, 0, %s23
    %s26 = sadd.s32 1, %s17
    %s27 = scalar_select %p24, %s26, %s17
    %p28 = scmp.ge.s32.totalorder %s27, 2
    %s29 = scalar_select %p28, 0, %s27
    %s30 = ssub.s32 %s17, %s29
    %s31 = ssub.s32 %s18, %s25
    %s32 = sor.u32 %s30, %s31
    %p33 = scmp.eq.s32.totalorder %s32, 0
    %s35 = sadd.s32 %s34, 1
    %s36 = scalar_select %p33, %s34, %s35
    %p39 = pneg %p33
    %p40 = scmp.eq.s32.totalorder %s10, 1
    %p41 = por %p39, %p40
    %p42 = scmp.ne.s32.totalorder %s34, %s37
    %p43 = scmp.eq.s32.totalorder %s10, 0
    %p44 = por %p42, %p43
    %p45 = scmp.ne.s32.totalorder %s34, %s37
    %p46 = scmp.eq.s32.totalorder %s15, 1
    %p47 = por %p45, %p46
    %p48 = scmp.ne.s32.totalorder %s37, %s38
    %p49 = scmp.eq.s32.totalorder %s15, 0
    %p50 = por %p48, %p49
    %p51 = scmp.ne.s32.totalorder %s37, %s38
    %p52 = scmp.eq.s32.totalorder %s16, 1
    %p53 = por %p51, %p52
    %p55 = scmp.ne.s32.totalorder %s38, %s54
    %p56 = scmp.eq.s32.totalorder %s16, 0
    %p57 = por %p55, %p56
    %s58 = ssub.s32 %s17, %s29
    %s59 = ssub.s32 %s18, %s25
    %s60 = sor.u32 %s58, %s59
    %p61 = scmp.eq.s32.totalorder %s60, 0
    %s63 = sadd.s32 %s62, 1
    %s64 = scalar_select %p61, %s62, %s63
    %p67 = pneg %p61
    %p68 = scmp.eq.s32.totalorder %s10, 1
    %p69 = por %p67, %p68
    %p70 = scmp.ne.s32.totalorder %s62, %s65
    %p71 = scmp.eq.s32.totalorder %s10, 0
    %p72 = por %p70, %p71
    %p73 = scmp.ne.s32.totalorder %s62, %s65
    %p74 = scmp.eq.s32.totalorder %s15, 1
    %p75 = por %p73, %p74
    %p76 = scmp.ne.s32.totalorder %s65, %s66
    %p77 = scmp.eq.s32.totalorder %s15, 0
    %p78 = por %p76, %p77
    %p79 = scmp.ne.s32.totalorder %s65, %s66
    %p80 = scmp.eq.s32.totalorder %s16, 1
    %p81 = por %p79, %p80
    %p83 = scmp.ne.s32.totalorder %s66, %s82
    %p84 = scmp.eq.s32.totalorder %s16, 0
    %p85 = por %p83, %p84
    %s86 = ssub.s32 %s17, %s29
    %s87 = ssub.s32 %s18, %s25
    %s88 = sor.u32 %s86, %s87
    %p89 = scmp.eq.s32.totalorder %s88, 0
    %s91 = sadd.s32 %s90, 1
    %s92 = scalar_select %p89, %s90, %s91
    %p95 = pneg %p89
    %p96 = scmp.eq.s32.totalorder %s10, 1
    %p97 = por %p95, %p96
    %p98 = scmp.ne.s32.totalorder %s90, %s93
    %p99 = scmp.eq.s32.totalorder %s10, 0
    %p100 = por %p98, %p99
    %p101 = scmp.ne.s32.totalorder %s90, %s93
    %p102 = scmp.eq.s32.totalorder %s15, 1
    %p103 = por %p101, %p102
    %p104 = scmp.ne.s32.totalorder %s93, %s94
    %p105 = scmp.eq.s32.totalorder %s15, 0
    %p106 = por %p104, %p105
    %p107 = scmp.ne.s32.totalorder %s93, %s94
    %p108 = scmp.eq.s32.totalorder %s16, 1
    %p109 = por %p107, %p108
    %p111 = scmp.ne.s32.totalorder %s94, %s110
    %p112 = scmp.eq.s32.totalorder %s16, 0
    %p113 = por %p111, %p112
    %s115 = sadd.s32 %s114, 1
    %p118 = scmp.eq.s32.totalorder %s10, 1
    %p119 = scmp.ne.s32.totalorder %s114, %s116
    %p120 = scmp.eq.s32.totalorder %s10, 0
    %p121 = por %p119, %p120
    %p122 = scmp.ne.s32.totalorder %s114, %s116
    %p123 = scmp.eq.s32.totalorder %s15, 1
    %p124 = por %p122, %p123
    %p125 = scmp.ne.s32.totalorder %s116, %s117
    %p126 = scmp.eq.s32.totalorder %s15, 0
    %p127 = por %p125, %p126
    %p128 = scmp.ne.s32.totalorder %s116, %s117
    %p129 = scmp.eq.s32.totalorder %s16, 1
    %p130 = por %p128, %p129
    %p132 = scmp.ne.s32.totalorder %s117, %s131
    %p133 = scmp.eq.s32.totalorder %s16, 0
    %p134 = por %p132, %p133
    %s135 = ssub.s32 %s17, %s29
    %s136 = ssub.s32 %s18, %s25
    %s137 = sor.u32 %s135, %s136
    %p138 = scmp.eq.s32.totalorder %s137, 0
    %s140 = sadd.s32 %s139, 1
    %s141 = scalar_select %p138, %s139, %s140
    %p144 = pneg %p138
    %p145 = scmp.eq.s32.totalorder %s10, 1
    %p146 = por %p144, %p145
    %p147 = scmp.ne.s32.totalorder %s139, %s142
    %p148 = scmp.eq.s32.totalorder %s10, 0
    %p149 = por %p147, %p148
    %p150 = scmp.ne.s32.totalorder %s139, %s142
    %p151 = scmp.eq.s32.totalorder %s15, 1
    %p152 = por %p150, %p151
    %p153 = scmp.ne.s32.totalorder %s142, %s143
    %p154 = scmp.eq.s32.totalorder %s15, 0
    %p155 = por %p153, %p154
    %p156 = scmp.ne.s32.totalorder %s142, %s143
    %p157 = scmp.eq.s32.totalorder %s16, 1
    %p158 = por %p156, %p157
    %p160 = scmp.ne.s32.totalorder %s143, %s159
    %p161 = scmp.eq.s32.totalorder %s16, 0
    %p162 = por %p160, %p161
    %p163 = scmp.le.s32.totalorder 1, %s10
    %p164 = scmp.lt.s32.totalorder %s10, 3
    %p165 = pnand %p163, %p164
    %p166 = pneg %p165
    // Predicated region
    $region9: #{upsample_network_forward.5} parent=5 // pred_check
      _
    $region10: #{upsample_network_forward.5} parent=5 // pred_check_branch
      %168 = sbr.rel (%p165) target = $region12
    $region11: #{upsample_network_forward.5} parent=5 // pred_region
      %s169 = ssub.s32 %s10, 1
      // Predicated region
      $region13: #{upsample_network_forward.5} parent=11 // pred_check
        %p170 = pneg %p127
      $region14: #{upsample_network_forward.5} parent=11 // pred_check_branch
        %172 = sbr.rel (%p170) target = $region16
      $region15: #{upsample_network_forward.5} parent=11 // pred_region
        _
      $region16: #{upsample_network_forward.5} parent=11 // pred_fallthru
        _
    $region12: #{upsample_network_forward.5} parent=5 // pred_fallthru
      _
    %p173 = scmp.lt.s32.totalorder %s10, 2
    // Predicated region
    $region17: #{upsample_network_forward.5} parent=5 // pred_check
      %p174 = pneg %p173
    $region18: #{upsample_network_forward.5} parent=5 // pred_check_branch
      %176 = sbr.rel (%p174) target = $region20
    $region19: #{upsample_network_forward.5} parent=5 // pred_region
      // Predicated region
      $region21: #{upsample_network_forward.5} parent=19 // pred_check
        %p177 = pneg %p44
      $region22: #{upsample_network_forward.5} parent=19 // pred_check_branch
        %179 = sbr.rel (%p177) target = $region24
      $region23: #{upsample_network_forward.5} parent=19 // pred_region
        %s180 = smul.u32 4, %s18
        %p181 = scmp.lt.s32.totalorder %s17, 1
        %s182 = scalar_select %p181, %s17, 1
        %p183 = scmp.lt.s32.totalorder %s180, 3
        %s184 = scalar_select %p183, %s180, 3
        %s185 = smul.addr %s182, 4
        %s186 = sadd.s32 %s184, %s185
        %s187 = smul.addr %s186, 8
        %s188 = scalar_lea.vmem %s0, %s187
        %s189 = smul.u32 4, %s18
      $region24: #{upsample_network_forward.5} parent=19 // pred_fallthru
        _
      // Predicated region
      $region25: #{upsample_network_forward.5} parent=19 // pred_check
        %p190 = pneg %p72
      $region26: #{upsample_network_forward.5} parent=19 // pred_check_branch
        %192 = sbr.rel (%p190) target = $region28
      $region27: #{upsample_network_forward.5} parent=19 // pred_region
        %p193 = scmp.lt.s32.totalorder %s17, 1
        %s194 = scalar_select %p193, %s17, 1
        %p195 = scmp.lt.s32.totalorder %s18, 0
        %s196 = scalar_select %p195, %s18, 0
        %s197 = sadd.s32 %s196, %s194
        %s198 = scalar_lea.vmem %s1, %s197
      $region28: #{upsample_network_forward.5} parent=19 // pred_fallthru
        _
      // Predicated region
      $region29: #{upsample_network_forward.5} parent=19 // pred_check
        %p199 = pneg %p100
      $region30: #{upsample_network_forward.5} parent=19 // pred_check_branch
        %201 = sbr.rel (%p199) target = $region32
      $region31: #{upsample_network_forward.5} parent=19 // pred_region
        %p202 = scmp.lt.s32.totalorder %s17, 1
        %s203 = scalar_select %p202, %s17, 1
        %p204 = scmp.lt.s32.totalorder %s18, 0
        %s205 = scalar_select %p204, %s18, 0
        %s206 = sadd.s32 %s205, %s203
        %s207 = scalar_lea.vmem %s2, %s206
      $region32: #{upsample_network_forward.5} parent=19 // pred_fallthru
        _
    $region20: #{upsample_network_forward.5} parent=5 // pred_fallthru
      _
    %p208 = scmp.le.s32.totalorder 1, %s10
    %p209 = scmp.lt.s32.totalorder %s10, 3
    %p210 = pnand %p208, %p209
    %p211 = pneg %p210
    // Predicated region
    $region33: #{upsample_network_forward.5} parent=5 // pred_check
      _
    $region34: #{upsample_network_forward.5} parent=5 // pred_check_branch
      %213 = sbr.rel (%p210) target = $region36
    $region35: #{upsample_network_forward.5} parent=5 // pred_region
      %s214 = ssub.s32 %s10, 1
      %s215 = smul.u32 4, %s20
      %p216 = scmp.lt.s32.totalorder %s19, 1
      %s217 = scalar_select %p216, %s19, 1
      %p218 = scmp.lt.s32.totalorder %s215, 3
      %s219 = scalar_select %p218, %s215, 3
      %s220 = smul.addr %s217, 4
      %s221 = sadd.s32 %s219, %s220
      %s222 = smul.addr %s221, 8
      %s223 = scalar_lea.vmem %s0, %s222
      %p224 = pneg %p50
      %p225 = pneg %p47
      %p226 = scmp.lt.s32.totalorder %s19, 1
      %s227 = scalar_select %p226, %s19, 1
      %p228 = scmp.lt.s32.totalorder %s20, 0
      %s229 = scalar_select %p228, %s20, 0
      %s230 = sadd.s32 %s229, %s227
      %s231 = scalar_lea.vmem %s1, %s230
      %p232 = pneg %p78
      %p233 = pneg %p75
      %p234 = scmp.lt.s32.totalorder %s19, 1
      %s235 = scalar_select %p234, %s19, 1
      %p236 = scmp.lt.s32.totalorder %s20, 0
      %s237 = scalar_select %p236, %s20, 0
      %s238 = sadd.s32 %s237, %s235
      %s239 = scalar_lea.vmem %s2, %s238
      %p240 = pneg %p106
      %p241 = pneg %p103
      %p242 = pneg %p127
      %p243 = pneg %p124
      %p244 = pneg %p155
      %p245 = pneg %p152
      %s246 = smul.u32 8, %s20
      %p247 = scmp.lt.s32.totalorder %s19, 1
      %s248 = scalar_select %p247, %s19, 1
      %p249 = scmp.lt.s32.totalorder %s246, 7
      %s250 = scalar_select %p249, %s246, 7
      %s251 = smul.addr %s248, 8
      %s252 = sadd.s32 %s250, %s251
      %s253 = smul.addr %s252, 8
      %s254 = scalar_lea.vmem %s4, %s253
      %s255 = smul.u32 4, %s20
      %p256 = scmp.lt.s32.totalorder %s19, 1
      %s257 = scalar_select %p256, %s19, 1
      %p258 = scmp.lt.s32.totalorder %s255, 3
      %s259 = scalar_select %p258, %s255, 3
      %s260 = smul.addr %s257, 4
      %s261 = sadd.s32 %s259, %s260
      %s262 = smul.addr %s261, 8
      %s263 = scalar_lea.vmem %s0, %s262
      %s264 = smul.u32 4, %s20
      %p265 = scmp.lt.s32.totalorder %s19, 1
      %s266 = scalar_select %p265, %s19, 1
      %p267 = scmp.lt.s32.totalorder %s20, 0
      %s268 = scalar_select %p267, %s20, 0
      %s269 = sadd.s32 %s268, %s266
      %s270 = scalar_lea.vmem %s1, %s269
      %p271 = scmp.lt.s32.totalorder %s19, 1
      %s272 = scalar_select %p271, %s19, 1
      %p273 = scmp.lt.s32.totalorder %s20, 0
      %s274 = scalar_select %p273, %s20, 0
      %s275 = sadd.s32 %s274, %s272
      %s276 = scalar_lea.vmem %s2, %s275
      %s277 = smul.u32 8, %s20
      %p278 = scmp.lt.s32.totalorder %s19, 1
      %s279 = scalar_select %p278, %s19, 1
      %p280 = scmp.lt.s32.totalorder %s277, 7
      %s281 = scalar_select %p280, %s277, 7
      %s282 = smul.addr %s279, 8
      %s283 = sadd.s32 %s281, %s282
      %s284 = smul.addr %s283, 8
      %s285 = scalar_lea.vmem %s4, %s284
      %s286 = smul.u32 8, %s20
      %v287 = vld [vmem:[%s263] sm:$0xff]
      %v288 = vld [vmem:[%s263 + $0x8] sm:$0xff]
      %v289 = vld [vmem:[%s263 + $0x10] sm:$0xff]
      %v290 = vld [vmem:[%s263 + $0x18] sm:$0xff]
      %v291 = vld [vmem:[%s270] sm:$0x1]
      %v292 = vld [vmem:[%s276] sm:$0x1]
      %vm297 = vcmask 1040384
      %v298 = vrot.slane %v287, 7
      %v299 = vrot.slane %v288, 7
      %v300 = vsel %vm297, %v298, %v299
      %v301 = vrot.slane %v289, 7
      %v302 = vsel %vm297, %v299, %v301
      %v303 = vrot.slane %v290, 7
      %v304 = vsel %vm297, %v301, %v303
      %v311 = vlaneseq
      %v312 = vshrl.u32 %v311, 7
      %v313 = vsub.s32 0, %v312
      %v314 = vrot.slane %v292, %v313
      %v316 = vsel %vm297, %v291, %v298
      %v317 = vsel %vm297, %v303, %v314
      %v318 = vld [vmem:[%s3] sm:$0xff]
      %v319 = vld [vmem:[%s3 + $0x8] sm:$0xff]
      %v320 = vld [vmem:[%s3 + $0x10] sm:$0xff]
      %v321 = vld [vmem:[%s3 + $0x18] sm:$0xff]
      %v322 = vld [vmem:[%s3 + $0x20] sm:$0xff]
      %v323 = vld [vmem:[%s3 + $0x28] sm:$0xff]
      %v324 = vld [vmem:[%s3 + $0x30] sm:$0xff]
      %v325 = vld [vmem:[%s3 + $0x38] sm:$0xff]
      %vm326 = vcmask 277504
      %v328 = vsel %vm326, %v318, 0
      %v331 = vsel %vm326, %v319, 0
      %v334 = vsel %vm326, %v320, 0
      %v337 = vsel %vm326, %v321, 0
      %v340 = vsel %vm326, %v322, 0
      %v343 = vsel %vm326, %v323, 0
      %v346 = vsel %vm326, %v324, 0
      %v349 = vsel %vm326, %v325, 0
      %vm351 = vcmask 1041408
      %v353 = vsel %vm351, %v317, 0
      %355 = vmatprep.subr.mxu0 0.0
      %356 = vmatpush1.msra.mxu0 0.0
      %357 = vmatprep.subr.mxu0 0.0
      %358 = vmatpush1.msra.mxu0 0.0
      %359 = vmatprep.subr.mxu0 0.0
      %360 = vmatpush1.msra.mxu0 0.0
      %361 = vmatprep.subr.mxu0 0.0
      %362 = vmatpush1.msra.mxu0 0.0
      %363 = vmatprep.subr.mxu0 0.0
      %364 = vmatpush1.msra.mxu0 0.0
      %365 = vmatprep.subr.mxu0 0.0
      %366 = vmatpush1.msra.mxu0 0.0
      %367 = vmatprep.subr.mxu0 0.0
      %368 = vmatpush1.msra.mxu0 0.0
      %369 = vmatprep.subr.mxu0 0.0
      %370 = vmatpush1.msra.mxu0 0.0
      %371 = vmatprep.subr.mxu0 0.0
      %372 = vmatpush1.msra.mxu0 0.0
      %373 = vmatprep.subr.mxu0 0.0
      %374 = vmatpush1.msra.mxu0 0.0
      %375 = vmatprep.subr.mxu0 0.0
      %376 = vmatpush1.msra.mxu0 0.0
      %377 = vmatprep.subr.mxu0 0.0
      %378 = vmatpush1.msra.mxu0 %v353
      %379 = vmatprep.subr.mxu0 0.0
      %380 = vmatpush1.msra.mxu0 %v304
      %381 = vmatprep.subr.mxu0 0.0
      %382 = vmatpush1.msra.mxu0 %v302
      %383 = vmatprep.subr.mxu0 0.0
      %384 = vmatpush1.msra.mxu0 %v300
      %385 = vmatprep.subr.mxu0 0.0
      %386 = vmatpush1.msra.mxu0 %v316
      %387 = vmatprep.subr.mxu0 0.0
      %388 = vmatpush2.msra.mxu0 0.0
      %389 = vmatprep.subr.mxu0 0.0
      %390 = vmatpush2.msra.mxu0 0.0
      %391 = vmatprep.subr.mxu0 0.0
      %392 = vmatpush2.msra.mxu0 0.0
      %393 = vmatprep.subr.mxu0 0.0
      %394 = vmatpush2.msra.mxu0 0.0
      %395 = vmatprep.subr.mxu0 0.0
      %396 = vmatpush2.msra.mxu0 0.0
      %397 = vmatprep.subr.mxu0 0.0
      %398 = vmatpush2.msra.mxu0 0.0
      %399 = vmatprep.subr.mxu0 0.0
      %400 = vmatpush2.msra.mxu0 0.0
      %401 = vmatprep.subr.mxu0 0.0
      %402 = vmatpush2.msra.mxu0 0.0
      %403 = vmatprep.subr.mxu0 0.0
      %404 = vmatpush2.msra.mxu0 0.0
      %405 = vmatprep.subr.mxu0 0.0
      %406 = vmatpush2.msra.mxu0 0.0
      %407 = vmatprep.subr.mxu0 0.0
      %408 = vmatpush2.msra.mxu0 0.0
      %409 = vmatprep.subr.mxu0 0.0
      %410 = vmatpush2.msra.mxu0 0.0
      %411 = vmatprep.subr.mxu0 0.0
      %412 = vmatpush2.msra.mxu0 0.0
      %413 = vmatprep.subr.mxu0 0.0
      %414 = vmatpush2.msra.mxu0 0.0
      %415 = vmatprep.subr.mxu0 0.0
      %416 = vmatpush2.msra.mxu0 0.0
      %417 = vmatprep.subr.mxu0 0.0
      %418 = vmatpush2.msra.mxu0 0.0
      %419 = vmatprep.mubr.f32.mxu0 0.0
      %420 = vmatmul.mubr.f32.gmra.mxu0 %v328
      %v421 = vpop.f32.mrf.mxu0
      %v422 = vadd.f32 0.0, %v421
      %v423 = vpop.f32.mrf.mxu0
      %424 = vmatprep.mubr.f32.mxu0 0.0
      %425 = vmatmul.mubr.f32.gmra.mxu0 %v331
      %v426 = vpop.f32.mrf.mxu0
      %v427 = vadd.f32 0.0, %v426
      %v428 = vpop.f32.mrf.mxu0
      %429 = vmatprep.mubr.f32.mxu0 0.0
      %430 = vmatmul.mubr.f32.gmra.mxu0 %v334
      %v431 = vpop.f32.mrf.mxu0
      %v432 = vadd.f32 0.0, %v431
      %v433 = vpop.f32.mrf.mxu0
      %434 = vmatprep.mubr.f32.mxu0 0.0
      %435 = vmatmul.mubr.f32.gmra.mxu0 %v337
      %v436 = vpop.f32.mrf.mxu0
      %v437 = vadd.f32 0.0, %v436
      %v438 = vpop.f32.mrf.mxu0
      %439 = vmatprep.mubr.f32.mxu0 0.0
      %440 = vmatmul.mubr.f32.gmra.mxu0 %v340
      %v441 = vpop.f32.mrf.mxu0
      %v442 = vadd.f32 0.0, %v441
      %v443 = vpop.f32.mrf.mxu0
      %444 = vmatprep.mubr.f32.mxu0 0.0
      %445 = vmatmul.mubr.f32.gmra.mxu0 %v343
      %v446 = vpop.f32.mrf.mxu0
      %v447 = vadd.f32 0.0, %v446
      %v448 = vpop.f32.mrf.mxu0
      %449 = vmatprep.mubr.f32.mxu0 0.0
      %450 = vmatmul.mubr.f32.gmra.mxu0 %v346
      %v451 = vpop.f32.mrf.mxu0
      %v452 = vadd.f32 0.0, %v451
      %v453 = vpop.f32.mrf.mxu0
      %454 = vmatprep.mubr.f32.mxu0 0.0
      %455 = vmatmul.mubr.f32.gmra.mxu0 %v349
      %v456 = vpop.f32.mrf.mxu0
      %v457 = vadd.f32 0.0, %v456
      %v458 = vpop.f32.mrf.mxu0
      %459 = vdwg.mxu0
      %vm460 = vcmask 130048
      %461 = vst.msk [vmem:[%s285] sm:$0xff] %vm460, %v422
      %462 = vst.msk [vmem:[%s285 + $0x8] sm:$0xff] %vm460, %v427
      %463 = vst.msk [vmem:[%s285 + $0x10] sm:$0xff] %vm460, %v432
      %464 = vst.msk [vmem:[%s285 + $0x18] sm:$0xff] %vm460, %v437
      %465 = vst.msk [vmem:[%s285 + $0x20] sm:$0xff] %vm460, %v442
      %466 = vst.msk [vmem:[%s285 + $0x28] sm:$0xff] %vm460, %v447
      %467 = vst.msk [vmem:[%s285 + $0x30] sm:$0xff] %vm460, %v452
      %468 = vst.msk [vmem:[%s285 + $0x38] sm:$0xff] %vm460, %v457
      %s469 = smul.u32 8, %s20
      %p470 = scmp.lt.s32.totalorder %s19, 1
      %s471 = scalar_select %p470, %s19, 1
      %p472 = scmp.lt.s32.totalorder %s469, 7
      %s473 = scalar_select %p472, %s469, 7
      %s474 = smul.addr %s471, 8
      %s475 = sadd.s32 %s473, %s474
      %s476 = smul.addr %s475, 8
      %s477 = scalar_lea.vmem %s4, %s476
      // Predicated region
      $region37: #{upsample_network_forward.5} parent=35 // pred_check
        %p478 = pneg %p152
      $region38: #{upsample_network_forward.5} parent=35 // pred_check_branch
        %480 = sbr.rel (%p478) target = $region40
      $region39: #{upsample_network_forward.5} parent=35 // pred_region
        %s481 = smul.u32 8, %s20
      $region40: #{upsample_network_forward.5} parent=35 // pred_fallthru
        _
    $region36: #{upsample_network_forward.5} parent=5 // pred_fallthru
      _
    %p482 = scmp.le.s32.totalorder 2, %s10
    // Predicated region
    $region41: #{upsample_network_forward.5} parent=5 // pred_check
      %p483 = pneg %p482
    $region42: #{upsample_network_forward.5} parent=5 // pred_check_branch
      %485 = sbr.rel (%p483) target = $region44
    $region43: #{upsample_network_forward.5} parent=5 // pred_region
      %s486 = ssub.s32 %s10, 2
      // Predicated region
      $region45: #{upsample_network_forward.5} parent=43 // pred_check
        %p487 = pneg %p158
      $region46: #{upsample_network_forward.5} parent=43 // pred_check_branch
        %489 = sbr.rel (%p487) target = $region48
      $region47: #{upsample_network_forward.5} parent=43 // pred_region
        %s490 = smul.u32 8, %s22
        %p491 = scmp.lt.s32.totalorder %s21, 1
        %s492 = scalar_select %p491, %s21, 1
        %p493 = scmp.lt.s32.totalorder %s490, 7
        %s494 = scalar_select %p493, %s490, 7
        %s495 = smul.addr %s492, 8
        %s496 = sadd.s32 %s494, %s495
        %s497 = smul.addr %s496, 8
        %s498 = scalar_lea.vmem %s4, %s497
      $region48: #{upsample_network_forward.5} parent=43 // pred_fallthru
        _
    $region44: #{upsample_network_forward.5} parent=5 // pred_fallthru
      _
  $region6: #{upsample_network_forward.5} parent=0 // loop_footer
    %s14 = sadd.s32 1, %s10
  $region7: #{upsample_network_forward.5} parent=0 // loop_footer_branch
    %9 = sbr.rel target = $region3
  $region8: #{upsample_network_forward.5} parent=0 // loop_exit
    _

// kernel: upsample_network_forward.3
$region0: #{upsample_network_forward.3}
  #allocation0 [shape = 'u32[]', space=smem, size = 0x4, offset = 0x4, fixed_abs, tag = 'smem constant byte address 0x4 - core index']
  #allocation1 [shape = 'u32[144,128]{1,0:T(1,128)}', space=vmem, size = 0x12000, scoped, tag = 'internal scratch']
  %s0 = inlined_call_operand.vmem [shape: bf16[2,12,80], index: 0, kind: input, shape index: {}]
  %s1 = inlined_call_operand.vmem [shape: bf16[80,32], index: 1, kind: input, shape index: {}]
  %s2 = inlined_call_operand.vmem [shape: f32[1,32], index: 2, kind: input, shape index: {}]
  %s3 = inlined_call_operand.vmem [shape: f32[1,32], index: 3, kind: input, shape index: {}]
  %s4 = inlined_call_operand.vmem [shape: bf16[2,32,32], index: 4, kind: input, shape index: {}]
  %s5 = inlined_call_operand.vmem [shape: f32[2,1,32], index: 5, kind: input, shape index: {}]
  %s6 = inlined_call_operand.vmem [shape: f32[2,1,32], index: 6, kind: input, shape index: {}]
  %s7 = inlined_call_operand.vmem [shape: bf16[2,32,32], index: 7, kind: input, shape index: {}]
  %s8 = inlined_call_operand.vmem [shape: f32[2,1,32], index: 8, kind: input, shape index: {}]
  %s9 = inlined_call_operand.vmem [shape: f32[2,1,32], index: 9, kind: input, shape index: {}]
  %s10 = inlined_call_operand.vmem [shape: bf16[32,16], index: 10, kind: input, shape index: {}]
  %s11 = inlined_call_operand.vmem [shape: f32[1,16], index: 11, kind: input, shape index: {}]
  %s12 = inlined_call_operand.vmem [shape: f32[2,12,16], index: 12, kind: output, shape index: {}]
  %s13 = sld [smem:[#allocation0]]
  $region81: #{upsample_network_forward.3} parent=0
    _
  %s15 = ssub.s32 1, %s13
  %s16 = scalar_select 0, %s15, %s13
  loop: start=0, step=1, limit=4
  $region2: #{upsample_network_forward.3} parent=0 // loop_pre_header
    _
  $region3: #{upsample_network_forward.3} parent=0 // loop_header
    %s18 = sphi 0, %s22
    %p19 = scmp.ge.s32.totalorder %s18, 4
    %s25 = sphi 0, %s37
    %s26 = sphi 0, %s33
    %s27 = sphi 0, %s25
    %s28 = sphi 0, %s26
    %s29 = sphi 0, %s27
    %s30 = sphi 0, %s28
    %s42 = sphi 0, %s44
    %s45 = sphi 0, %s42
    %s46 = sphi 0, %s45
    %s62 = sphi 0, %s46
    %s66 = sphi 0, %s66
    %s68 = sphi 0, %s66
    %s69 = sphi 0, %s68
    %s83 = sphi 0, %s69
    %s87 = sphi 0, %s87
    %s89 = sphi 0, %s87
    %s90 = sphi 0, %s89
    %s104 = sphi 0, %s90
    %s108 = sphi 0, %s108
    %s110 = sphi 0, %s108
    %s111 = sphi 0, %s110
    %s125 = sphi 0, %s111
    %s129 = sphi 0, %s129
    %s131 = sphi 0, %s129
    %s132 = sphi 0, %s131
    %s146 = sphi 0, %s132
    %s150 = sphi 0, %s150
    %s152 = sphi 0, %s150
    %s153 = sphi 0, %s152
    %s167 = sphi 0, %s153
    %s171 = sphi 0, %s171
    %s173 = sphi 0, %s171
    %s174 = sphi 0, %s173
    %s188 = sphi 0, %s174
    %s192 = sphi 0, %s192
    %s194 = sphi 0, %s192
    %s195 = sphi 0, %s194
    %s209 = sphi 0, %s195
    %s213 = sphi 0, %s213
    %s215 = sphi 0, %s213
    %s216 = sphi 0, %s215
    %s230 = sphi 0, %s216
    %s234 = sphi 0, %s234
    %s236 = sphi 0, %s234
    %s237 = sphi 0, %s236
    %s251 = sphi 0, %s237
    %s255 = sphi 0, %s255
    %s257 = sphi 0, %s255
    %s258 = sphi 0, %s257
    %s272 = sphi 0, %s258
    %s276 = sphi 0, %s276
    %s278 = sphi 0, %s276
    %s279 = sphi 0, %s278
    %s293 = sphi 0, %s279
    %s301 = sphi 0, %s303
    %s304 = sphi 0, %s301
    %s305 = sphi 0, %s304
    %s321 = sphi 0, %s305
  $region4: #{upsample_network_forward.3} parent=0 // loop_header_branch
    %21 = sbr.rel (%p19) target = $region8
  $region5: #{upsample_network_forward.3} parent=0 // loop_body
    %s23 = ssub.s32 %s18, 1
    %s24 = ssub.s32 %s18, 2
    %s31 = sadd.s32 1, %s26
    %p32 = scmp.ge.s32.totalorder %s31, 1
    %s33 = scalar_select %p32, 0, %s31
    %s34 = sadd.s32 1, %s25
    %s35 = scalar_select %p32, %s34, %s25
    %p36 = scmp.ge.s32.totalorder %s35, 2
    %s37 = scalar_select %p36, 0, %s35
    %s38 = ssub.s32 %s25, %s37
    %s39 = ssub.s32 %s26, %s33
    %s40 = sor.u32 %s38, %s39
    %p41 = scmp.eq.s32.totalorder %s40, 0
    %s43 = sadd.s32 %s42, 1
    %s44 = scalar_select %p41, %s42, %s43
    %p47 = pneg %p41
    %p48 = scmp.eq.s32.totalorder %s18, 1
    %p49 = por %p47, %p48
    %p50 = scmp.ne.s32.totalorder %s42, %s45
    %p51 = scmp.eq.s32.totalorder %s18, 0
    %p52 = por %p50, %p51
    %p53 = scmp.ne.s32.totalorder %s42, %s45
    %p54 = scmp.eq.s32.totalorder %s23, 1
    %p55 = por %p53, %p54
    %p56 = scmp.ne.s32.totalorder %s45, %s46
    %p57 = scmp.eq.s32.totalorder %s23, 0
    %p58 = por %p56, %p57
    %p59 = scmp.ne.s32.totalorder %s45, %s46
    %p60 = scmp.eq.s32.totalorder %s24, 1
    %p61 = por %p59, %p60
    %p63 = scmp.ne.s32.totalorder %s46, %s62
    %p64 = scmp.eq.s32.totalorder %s24, 0
    %p65 = por %p63, %p64
    %s67 = sadd.s32 %s66, 1
    %p70 = scmp.eq.s32.totalorder %s18, 1
    %p71 = scmp.ne.s32.totalorder %s66, %s68
    %p72 = scmp.eq.s32.totalorder %s18, 0
    %p73 = por %p71, %p72
    %p74 = scmp.ne.s32.totalorder %s66, %s68
    %p75 = scmp.eq.s32.totalorder %s23, 1
    %p76 = por %p74, %p75
    %p77 = scmp.ne.s32.totalorder %s68, %s69
    %p78 = scmp.eq.s32.totalorder %s23, 0
    %p79 = por %p77, %p78
    %p80 = scmp.ne.s32.totalorder %s68, %s69
    %p81 = scmp.eq.s32.totalorder %s24, 1
    %p82 = por %p80, %p81
    %p84 = scmp.ne.s32.totalorder %s69, %s83
    %p85 = scmp.eq.s32.totalorder %s24, 0
    %p86 = por %p84, %p85
    %s88 = sadd.s32 %s87, 1
    %p91 = scmp.eq.s32.totalorder %s18, 1
    %p92 = scmp.ne.s32.totalorder %s87, %s89
    %p93 = scmp.eq.s32.totalorder %s18, 0
    %p94 = por %p92, %p93
    %p95 = scmp.ne.s32.totalorder %s87, %s89
    %p96 = scmp.eq.s32.totalorder %s23, 1
    %p97 = por %p95, %p96
    %p98 = scmp.ne.s32.totalorder %s89, %s90
    %p99 = scmp.eq.s32.totalorder %s23, 0
    %p100 = por %p98, %p99
    %p101 = scmp.ne.s32.totalorder %s89, %s90
    %p102 = scmp.eq.s32.totalorder %s24, 1
    %p103 = por %p101, %p102
    %p105 = scmp.ne.s32.totalorder %s90, %s104
    %p106 = scmp.eq.s32.totalorder %s24, 0
    %p107 = por %p105, %p106
    %s109 = sadd.s32 %s108, 1
    %p112 = scmp.eq.s32.totalorder %s18, 1
    %p113 = scmp.ne.s32.totalorder %s108, %s110
    %p114 = scmp.eq.s32.totalorder %s18, 0
    %p115 = por %p113, %p114
    %p116 = scmp.ne.s32.totalorder %s108, %s110
    %p117 = scmp.eq.s32.totalorder %s23, 1
    %p118 = por %p116, %p117
    %p119 = scmp.ne.s32.totalorder %s110, %s111
    %p120 = scmp.eq.s32.totalorder %s23, 0
    %p121 = por %p119, %p120
    %p122 = scmp.ne.s32.totalorder %s110, %s111
    %p123 = scmp.eq.s32.totalorder %s24, 1
    %p124 = por %p122, %p123
    %p126 = scmp.ne.s32.totalorder %s111, %s125
    %p127 = scmp.eq.s32.totalorder %s24, 0
    %p128 = por %p126, %p127
    %s130 = sadd.s32 %s129, 1
    %p133 = scmp.eq.s32.totalorder %s18, 1
    %p134 = scmp.ne.s32.totalorder %s129, %s131
    %p135 = scmp.eq.s32.totalorder %s18, 0
    %p136 = por %p134, %p135
    %p137 = scmp.ne.s32.totalorder %s129, %s131
    %p138 = scmp.eq.s32.totalorder %s23, 1
    %p139 = por %p137, %p138
    %p140 = scmp.ne.s32.totalorder %s131, %s132
    %p141 = scmp.eq.s32.totalorder %s23, 0
    %p142 = por %p140, %p141
    %p143 = scmp.ne.s32.totalorder %s131, %s132
    %p144 = scmp.eq.s32.totalorder %s24, 1
    %p145 = por %p143, %p144
    %p147 = scmp.ne.s32.totalorder %s132, %s146
    %p148 = scmp.eq.s32.totalorder %s24, 0
    %p149 = por %p147, %p148
    %s151 = sadd.s32 %s150, 1
    %p154 = scmp.eq.s32.totalorder %s18, 1
    %p155 = scmp.ne.s32.totalorder %s150, %s152
    %p156 = scmp.eq.s32.totalorder %s18, 0
    %p157 = por %p155, %p156
    %p158 = scmp.ne.s32.totalorder %s150, %s152
    %p159 = scmp.eq.s32.totalorder %s23, 1
    %p160 = por %p158, %p159
    %p161 = scmp.ne.s32.totalorder %s152, %s153
    %p162 = scmp.eq.s32.totalorder %s23, 0
    %p163 = por %p161, %p162
    %p164 = scmp.ne.s32.totalorder %s152, %s153
    %p165 = scmp.eq.s32.totalorder %s24, 1
    %p166 = por %p164, %p165
    %p168 = scmp.ne.s32.totalorder %s153, %s167
    %p169 = scmp.eq.s32.totalorder %s24, 0
    %p170 = por %p168, %p169
    %s172 = sadd.s32 %s171, 1
    %p175 = scmp.eq.s32.totalorder %s18, 1
    %p176 = scmp.ne.s32.totalorder %s171, %s173
    %p177 = scmp.eq.s32.totalorder %s18, 0
    %p178 = por %p176, %p177
    %p179 = scmp.ne.s32.totalorder %s171, %s173
    %p180 = scmp.eq.s32.totalorder %s23, 1
    %p181 = por %p179, %p180
    %p182 = scmp.ne.s32.totalorder %s173, %s174
    %p183 = scmp.eq.s32.totalorder %s23, 0
    %p184 = por %p182, %p183
    %p185 = scmp.ne.s32.totalorder %s173, %s174
    %p186 = scmp.eq.s32.totalorder %s24, 1
    %p187 = por %p185, %p186
    %p189 = scmp.ne.s32.totalorder %s174, %s188
    %p190 = scmp.eq.s32.totalorder %s24, 0
    %p191 = por %p189, %p190
    %s193 = sadd.s32 %s192, 1
    %p196 = scmp.eq.s32.totalorder %s18, 1
    %p197 = scmp.ne.s32.totalorder %s192, %s194
    %p198 = scmp.eq.s32.totalorder %s18, 0
    %p199 = por %p197, %p198
    %p200 = scmp.ne.s32.totalorder %s192, %s194
    %p201 = scmp.eq.s32.totalorder %s23, 1
    %p202 = por %p200, %p201
    %p203 = scmp.ne.s32.totalorder %s194, %s195
    %p204 = scmp.eq.s32.totalorder %s23, 0
    %p205 = por %p203, %p204
    %p206 = scmp.ne.s32.totalorder %s194, %s195
    %p207 = scmp.eq.s32.totalorder %s24, 1
    %p208 = por %p206, %p207
    %p210 = scmp.ne.s32.totalorder %s195, %s209
    %p211 = scmp.eq.s32.totalorder %s24, 0
    %p212 = por %p210, %p211
    %s214 = sadd.s32 %s213, 1
    %p217 = scmp.eq.s32.totalorder %s18, 1
    %p218 = scmp.ne.s32.totalorder %s213, %s215
    %p219 = scmp.eq.s32.totalorder %s18, 0
    %p220 = por %p218, %p219
    %p221 = scmp.ne.s32.totalorder %s213, %s215
    %p222 = scmp.eq.s32.totalorder %s23, 1
    %p223 = por %p221, %p222
    %p224 = scmp.ne.s32.totalorder %s215, %s216
    %p225 = scmp.eq.s32.totalorder %s23, 0
    %p226 = por %p224, %p225
    %p227 = scmp.ne.s32.totalorder %s215, %s216
    %p228 = scmp.eq.s32.totalorder %s24, 1
    %p229 = por %p227, %p228
    %p231 = scmp.ne.s32.totalorder %s216, %s230
    %p232 = scmp.eq.s32.totalorder %s24, 0
    %p233 = por %p231, %p232
    %s235 = sadd.s32 %s234, 1
    %p238 = scmp.eq.s32.totalorder %s18, 1
    %p239 = scmp.ne.s32.totalorder %s234, %s236
    %p240 = scmp.eq.s32.totalorder %s18, 0
    %p241 = por %p239, %p240
    %p242 = scmp.ne.s32.totalorder %s234, %s236
    %p243 = scmp.eq.s32.totalorder %s23, 1
    %p244 = por %p242, %p243
    %p245 = scmp.ne.s32.totalorder %s236, %s237
    %p246 = scmp.eq.s32.totalorder %s23, 0
    %p247 = por %p245, %p246
    %p248 = scmp.ne.s32.totalorder %s236, %s237
    %p249 = scmp.eq.s32.totalorder %s24, 1
    %p250 = por %p248, %p249
    %p252 = scmp.ne.s32.totalorder %s237, %s251
    %p253 = scmp.eq.s32.totalorder %s24, 0
    %p254 = por %p252, %p253
    %s256 = sadd.s32 %s255, 1
    %p259 = scmp.eq.s32.totalorder %s18, 1
    %p260 = scmp.ne.s32.totalorder %s255, %s257
    %p261 = scmp.eq.s32.totalorder %s18, 0
    %p262 = por %p260, %p261
    %p263 = scmp.ne.s32.totalorder %s255, %s257
    %p264 = scmp.eq.s32.totalorder %s23, 1
    %p265 = por %p263, %p264
    %p266 = scmp.ne.s32.totalorder %s257, %s258
    %p267 = scmp.eq.s32.totalorder %s23, 0
    %p268 = por %p266, %p267
    %p269 = scmp.ne.s32.totalorder %s257, %s258
    %p270 = scmp.eq.s32.totalorder %s24, 1
    %p271 = por %p269, %p270
    %p273 = scmp.ne.s32.totalorder %s258, %s272
    %p274 = scmp.eq.s32.totalorder %s24, 0
    %p275 = por %p273, %p274
    %s277 = sadd.s32 %s276, 1
    %p280 = scmp.eq.s32.totalorder %s18, 1
    %p281 = scmp.ne.s32.totalorder %s276, %s278
    %p282 = scmp.eq.s32.totalorder %s18, 0
    %p283 = por %p281, %p282
    %p284 = scmp.ne.s32.totalorder %s276, %s278
    %p285 = scmp.eq.s32.totalorder %s23, 1
    %p286 = por %p284, %p285
    %p287 = scmp.ne.s32.totalorder %s278, %s279
    %p288 = scmp.eq.s32.totalorder %s23, 0
    %p289 = por %p287, %p288
    %p290 = scmp.ne.s32.totalorder %s278, %s279
    %p291 = scmp.eq.s32.totalorder %s24, 1
    %p292 = por %p290, %p291
    %p294 = scmp.ne.s32.totalorder %s279, %s293
    %p295 = scmp.eq.s32.totalorder %s24, 0
    %p296 = por %p294, %p295
    %s297 = ssub.s32 %s25, %s37
    %s298 = ssub.s32 %s26, %s33
    %s299 = sor.u32 %s297, %s298
    %p300 = scmp.eq.s32.totalorder %s299, 0
    %s302 = sadd.s32 %s301, 1
    %s303 = scalar_select %p300, %s301, %s302
    %p306 = pneg %p300
    %p307 = scmp.eq.s32.totalorder %s18, 1
    %p308 = por %p306, %p307
    %p309 = scmp.ne.s32.totalorder %s301, %s304
    %p310 = scmp.eq.s32.totalorder %s18, 0
    %p311 = por %p309, %p310
    %p312 = scmp.ne.s32.totalorder %s301, %s304
    %p313 = scmp.eq.s32.totalorder %s23, 1
    %p314 = por %p312, %p313
    %p315 = scmp.ne.s32.totalorder %s304, %s305
    %p316 = scmp.eq.s32.totalorder %s23, 0
    %p317 = por %p315, %p316
    %p318 = scmp.ne.s32.totalorder %s304, %s305
    %p319 = scmp.eq.s32.totalorder %s24, 1
    %p320 = por %p318, %p319
    %p322 = scmp.ne.s32.totalorder %s305, %s321
    %p323 = scmp.eq.s32.totalorder %s24, 0
    %p324 = por %p322, %p323
    %p325 = scmp.le.s32.totalorder 1, %s18
    %p326 = scmp.lt.s32.totalorder %s18, 3
    %p327 = pnand %p325, %p326
    %p328 = pneg %p327
    // Predicated region
    $region9: #{upsample_network_forward.3} parent=5 // pred_check
      _
    $region10: #{upsample_network_forward.3} parent=5 // pred_check_branch
      %330 = sbr.rel (%p327) target = $region12
    $region11: #{upsample_network_forward.3} parent=5 // pred_region
      %s331 = ssub.s32 %s18, 1
      // Predicated region
      $region13: #{upsample_network_forward.3} parent=11 // pred_check
        %p332 = pneg %p79
      $region14: #{upsample_network_forward.3} parent=11 // pred_check_branch
        %334 = sbr.rel (%p332) target = $region16
      $region15: #{upsample_network_forward.3} parent=11 // pred_region
        _
      $region16: #{upsample_network_forward.3} parent=11 // pred_fallthru
        _
      // Predicated region
      $region17: #{upsample_network_forward.3} parent=11 // pred_check
        %p335 = pneg %p100
      $region18: #{upsample_network_forward.3} parent=11 // pred_check_branch
        %337 = sbr.rel (%p335) target = $region20
      $region19: #{upsample_network_forward.3} parent=11 // pred_region
        _
      $region20: #{upsample_network_forward.3} parent=11 // pred_fallthru
        _
      // Predicated region
      $region21: #{upsample_network_forward.3} parent=11 // pred_check
        %p338 = pneg %p121
      $region22: #{upsample_network_forward.3} parent=11 // pred_check_branch
        %340 = sbr.rel (%p338) target = $region24
      $region23: #{upsample_network_forward.3} parent=11 // pred_region
        _
      $region24: #{upsample_network_forward.3} parent=11 // pred_fallthru
        _
      // Predicated region
      $region25: #{upsample_network_forward.3} parent=11 // pred_check
        %p341 = pneg %p142
      $region26: #{upsample_network_forward.3} parent=11 // pred_check_branch
        %343 = sbr.rel (%p341) target = $region28
      $region27: #{upsample_network_forward.3} parent=11 // pred_region
        _
      $region28: #{upsample_network_forward.3} parent=11 // pred_fallthru
        _
      // Predicated region
      $region29: #{upsample_network_forward.3} parent=11 // pred_check
        %p344 = pneg %p163
      $region30: #{upsample_network_forward.3} parent=11 // pred_check_branch
        %346 = sbr.rel (%p344) target = $region32
      $region31: #{upsample_network_forward.3} parent=11 // pred_region
        _
      $region32: #{upsample_network_forward.3} parent=11 // pred_fallthru
        _
      // Predicated region
      $region33: #{upsample_network_forward.3} parent=11 // pred_check
        %p347 = pneg %p184
      $region34: #{upsample_network_forward.3} parent=11 // pred_check_branch
        %349 = sbr.rel (%p347) target = $region36
      $region35: #{upsample_network_forward.3} parent=11 // pred_region
        _
      $region36: #{upsample_network_forward.3} parent=11 // pred_fallthru
        _
      // Predicated region
      $region37: #{upsample_network_forward.3} parent=11 // pred_check
        %p350 = pneg %p205
      $region38: #{upsample_network_forward.3} parent=11 // pred_check_branch
        %352 = sbr.rel (%p350) target = $region40
      $region39: #{upsample_network_forward.3} parent=11 // pred_region
        _
      $region40: #{upsample_network_forward.3} parent=11 // pred_fallthru
        _
      // Predicated region
      $region41: #{upsample_network_forward.3} parent=11 // pred_check
        %p353 = pneg %p226
      $region42: #{upsample_network_forward.3} parent=11 // pred_check_branch
        %355 = sbr.rel (%p353) target = $region44
      $region43: #{upsample_network_forward.3} parent=11 // pred_region
        _
      $region44: #{upsample_network_forward.3} parent=11 // pred_fallthru
        _
      // Predicated region
      $region45: #{upsample_network_forward.3} parent=11 // pred_check
        %p356 = pneg %p247
      $region46: #{upsample_network_forward.3} parent=11 // pred_check_branch
        %358 = sbr.rel (%p356) target = $region48
      $region47: #{upsample_network_forward.3} parent=11 // pred_region
        _
      $region48: #{upsample_network_forward.3} parent=11 // pred_fallthru
        _
      // Predicated region
      $region49: #{upsample_network_forward.3} parent=11 // pred_check
        %p359 = pneg %p268
      $region50: #{upsample_network_forward.3} parent=11 // pred_check_branch
        %361 = sbr.rel (%p359) target = $region52
      $region51: #{upsample_network_forward.3} parent=11 // pred_region
        _
      $region52: #{upsample_network_forward.3} parent=11 // pred_fallthru
        _
      // Predicated region
      $region53: #{upsample_network_forward.3} parent=11 // pred_check
        %p362 = pneg %p289
      $region54: #{upsample_network_forward.3} parent=11 // pred_check_branch
        %364 = sbr.rel (%p362) target = $region56
      $region55: #{upsample_network_forward.3} parent=11 // pred_region
        _
      $region56: #{upsample_network_forward.3} parent=11 // pred_fallthru
        _
    $region12: #{upsample_network_forward.3} parent=5 // pred_fallthru
      _
    %p365 = scmp.lt.s32.totalorder %s18, 2
    // Predicated region
    $region57: #{upsample_network_forward.3} parent=5 // pred_check
      %p366 = pneg %p365
    $region58: #{upsample_network_forward.3} parent=5 // pred_check_branch
      %368 = sbr.rel (%p366) target = $region60
    $region59: #{upsample_network_forward.3} parent=5 // pred_region
      // Predicated region
      $region61: #{upsample_network_forward.3} parent=59 // pred_check
        %p369 = pneg %p52
      $region62: #{upsample_network_forward.3} parent=59 // pred_check_branch
        %371 = sbr.rel (%p369) target = $region64
      $region63: #{upsample_network_forward.3} parent=59 // pred_region
        %s372 = smul.u32 2, %s26
        %p373 = scmp.lt.s32.totalorder %s25, 1
        %s374 = scalar_select %p373, %s25, 1
        %p375 = scmp.lt.s32.totalorder %s372, 1
        %s376 = scalar_select %p375, %s372, 1
        %s377 = smul.addr %s374, 2
        %s378 = sadd.s32 %s376, %s377
        %s379 = smul.addr %s378, 4
        %s380 = scalar_lea.vmem %s0, %s379
        %s381 = smul.u32 2, %s26
      $region64: #{upsample_network_forward.3} parent=59 // pred_fallthru
        _
    $region60: #{upsample_network_forward.3} parent=5 // pred_fallthru
      _
    %p382 = scmp.le.s32.totalorder 1, %s18
    %p383 = scmp.lt.s32.totalorder %s18, 3
    %p384 = pnand %p382, %p383
    %p385 = pneg %p384
    // Predicated region
    $region65: #{upsample_network_forward.3} parent=5 // pred_check
      _
    $region66: #{upsample_network_forward.3} parent=5 // pred_check_branch
      %387 = sbr.rel (%p384) target = $region68
    $region67: #{upsample_network_forward.3} parent=5 // pred_region
      %s388 = ssub.s32 %s18, 1
      %s389 = smul.u32 2, %s28
      %p390 = scmp.lt.s32.totalorder %s27, 1
      %s391 = scalar_select %p390, %s27, 1
      %p392 = scmp.lt.s32.totalorder %s389, 1
      %s393 = scalar_select %p392, %s389, 1
      %s394 = smul.addr %s391, 2
      %s395 = sadd.s32 %s393, %s394
      %s396 = smul.addr %s395, 4
      %s397 = scalar_lea.vmem %s0, %s396
      %p398 = pneg %p58
      %p399 = pneg %p55
      %p400 = pneg %p79
      %p401 = pneg %p76
      %p402 = pneg %p100
      %p403 = pneg %p97
      %p404 = pneg %p121
      %p405 = pneg %p118
      %p406 = pneg %p142
      %p407 = pneg %p139
      %p408 = pneg %p163
      %p409 = pneg %p160
      %p410 = pneg %p184
      %p411 = pneg %p181
      %p412 = pneg %p205
      %p413 = pneg %p202
      %p414 = pneg %p226
      %p415 = pneg %p223
      %p416 = pneg %p247
      %p417 = pneg %p244
      %p418 = pneg %p268
      %p419 = pneg %p265
      %p420 = pneg %p289
      %p421 = pneg %p286
      %p422 = pneg %p317
      %p423 = pneg %p314
      %s424 = smul.u32 2, %s28
      %p425 = scmp.lt.s32.totalorder %s27, 1
      %s426 = scalar_select %p425, %s27, 1
      %p427 = scmp.lt.s32.totalorder %s424, 1
      %s428 = scalar_select %p427, %s424, 1
      %s429 = smul.addr %s426, 2
      %s430 = sadd.s32 %s428, %s429
      %s431 = smul.addr %s430, 8
      %s432 = scalar_lea.vmem %s12, %s431
      %s433 = smul.u32 2, %s28
      %p434 = scmp.lt.s32.totalorder %s27, 1
      %s435 = scalar_select %p434, %s27, 1
      %p436 = scmp.lt.s32.totalorder %s433, 1
      %s437 = scalar_select %p436, %s433, 1
      %s438 = smul.addr %s435, 2
      %s439 = sadd.s32 %s437, %s438
      %s440 = smul.addr %s439, 4
      %s441 = scalar_lea.vmem %s0, %s440
      %s442 = smul.u32 2, %s28
      %s443 = smul.u32 2, %s28
      %p444 = scmp.lt.s32.totalorder %s27, 1
      %s445 = scalar_select %p444, %s27, 1
      %p446 = scmp.lt.s32.totalorder %s443, 1
      %s447 = scalar_select %p446, %s443, 1
      %s448 = smul.addr %s445, 2
      %s449 = sadd.s32 %s447, %s448
      %s450 = smul.addr %s449, 8
      %s451 = scalar_lea.vmem %s12, %s450
      %s452 = smul.u32 2, %s28
      %v454 = vld [vmem:[%s441] sm:$0xf]
      %v455 = vld [vmem:[%s441 + $0x4] sm:$0x3]
      %v456 = vld [vmem:[%s1] sm:$0xf]
      %v457 = vld [vmem:[%s1 + $0x4] sm:$0xf]
      %v458 = vld [vmem:[%s1 + $0x8] sm:$0xf]
      %v459 = vld [vmem:[%s1 + $0xc] sm:$0xf]
      %v460 = vld [vmem:[%s1 + $0x10] sm:$0xf]
      %v461 = vld [vmem:[%s1 + $0x14] sm:$0xf]
      %v462 = vld [vmem:[%s1 + $0x18] sm:$0xf]
      %v463 = vld [vmem:[%s1 + $0x1c] sm:$0xf]
      %v464 = vld [vmem:[%s1 + $0x20] sm:$0xf]
      %v465 = vld [vmem:[%s1 + $0x24] sm:$0xf]
      %v468 = vunpack.c.l.b16 %v454
      %v469 = vunpack.c.l.b16 %v455
      %v470 = vpack.c.b16 %v469, %v468
      %v481 = vunpack.c.l.b16 %v456
      %v482 = vunpack.c.l.b16 %v457
      %v483 = vunpack.c.l.b16 %v458
      %v484 = vunpack.c.l.b16 %v459
      %v485 = vunpack.c.l.b16 %v460
      %v486 = vunpack.c.l.b16 %v461
      %v487 = vunpack.c.l.b16 %v462
      %v488 = vunpack.c.l.b16 %v463
      %v489 = vunpack.c.l.b16 %v464
      %v490 = vunpack.c.l.b16 %v465
      %v491 = vpack.c.b16 %v482, %v481
      %v492 = vpack.c.b16 %v484, %v483
      %v493 = vpack.c.b16 %v486, %v485
      %v494 = vpack.c.b16 %v488, %v487
      %v495 = vpack.c.b16 %v490, %v489
      %vm501 = vcmask 654336
      %v503 = vsel %vm501, %v470, 0
      %505 = vmatprep.subr.bf16.mxu0 0
      %506 = vmatpush1.bf16.msra.mxu0 0
      %507 = vmatprep.subr.bf16.mxu0 0
      %508 = vmatpush1.bf16.msra.mxu0 0
      %509 = vmatprep.subr.bf16.mxu0 0
      %510 = vmatpush1.bf16.msra.mxu0 0
      %511 = vmatprep.subr.bf16.mxu0 0
      %512 = vmatpush1.bf16.msra.mxu0 %v495
      %513 = vmatprep.subr.bf16.mxu0 0
      %514 = vmatpush1.bf16.msra.mxu0 %v494
      %515 = vmatprep.subr.bf16.mxu0 0
      %516 = vmatpush1.bf16.msra.mxu0 %v493
      %517 = vmatprep.subr.bf16.mxu0 0
      %518 = vmatpush1.bf16.msra.mxu0 %v492
      %519 = vmatprep.subr.bf16.mxu0 0
      %520 = vmatpush1.bf16.msra.mxu0 %v491
      %521 = vmatprep.subr.bf16.mxu0 0
      %522 = vmatpush2.bf16.msra.mxu0 0
      %523 = vmatprep.subr.bf16.mxu0 0
      %524 = vmatpush2.bf16.msra.mxu0 0
      %525 = vmatprep.subr.bf16.mxu0 0
      %526 = vmatpush2.bf16.msra.mxu0 0
      %527 = vmatprep.subr.bf16.mxu0 0
      %528 = vmatpush2.bf16.msra.mxu0 0
      %529 = vmatprep.subr.bf16.mxu0 0
      %530 = vmatpush2.bf16.msra.mxu0 0
      %531 = vmatprep.subr.bf16.mxu0 0
      %532 = vmatpush2.bf16.msra.mxu0 0
      %533 = vmatprep.subr.bf16.mxu0 0
      %534 = vmatpush2.bf16.msra.mxu0 0
      %535 = vmatprep.subr.bf16.mxu0 0
      %536 = vmatpush2.bf16.msra.mxu0 0
      %537 = vmatprep.mubr.bf16.mxu0 0
      %538 = vmatmul.mubr.bf16.gmra.mxu0 %v503
      %v539 = vpop.f32.mrf.mxu0
      %v540 = vadd.f32 0.0, %v539
      %v541 = vpop.f32.mrf.mxu0
      %v542 = vpop.f32.mrf.mxu0
      %v543 = vadd.f32 0.0, %v542
      %v544 = vpop.f32.mrf.mxu0
      %545 = vdwg.mxu0
      %v546 = vld [vmem:[%s2] sm:$0x1]
      %v548 = vlaneseq
      %v549 = vshrl.u32 %v548, 7
      %v550 = vsub.s32 0, %v549
      %v551 = vrot.slane %v546, %v550
      %v553 = vmul.f32 %v540, %v551
      %v554 = vmul.f32 %v543, %v551
      %v555 = vld [vmem:[%s3] sm:$0x1]
      %v557 = vlaneseq
      %v558 = vshrl.u32 %v557, 7
      %v559 = vsub.s32 0, %v558
      %v560 = vrot.slane %v555, %v559
      %v562 = vadd.f32 %v553, %v560
      %v563 = vadd.f32 %v554, %v560
      %v564 = vmax.f32 %v562, 0.0
      %v565 = vmax.f32 %v563, 0.0
      %v566 = vpack.c.bf16 %v565, %v564
      %v567 = vld [vmem:[%s4] sm:$0xf]
      %v568 = vld [vmem:[%s4 + $0x4] sm:$0xf]
      %v569 = vld [vmem:[%s4 + $0x8] sm:$0xf]
      %v570 = vld [vmem:[%s4 + $0xc] sm:$0xf]
      %v575 = vunpack.c.l.b16 %v567
      %v576 = vunpack.c.l.b16 %v568
      %v577 = vunpack.c.l.b16 %v569
      %v578 = vunpack.c.l.b16 %v570
      %v579 = vpack.c.b16 %v576, %v575
      %v580 = vpack.c.b16 %v578, %v577
      %vm583 = vcmask 261120
      %v585 = vsel %vm583, %v566, 0
      %587 = vmatprep.subr.bf16.mxu0 0
      %588 = vmatpush1.bf16.msra.mxu0 0
      %589 = vmatprep.subr.bf16.mxu0 0
      %590 = vmatpush1.bf16.msra.mxu0 0
      %591 = vmatprep.subr.bf16.mxu0 0
      %592 = vmatpush1.bf16.msra.mxu0 0
      %593 = vmatprep.subr.bf16.mxu0 0
      %594 = vmatpush1.bf16.msra.mxu0 0
      %595 = vmatprep.subr.bf16.mxu0 0
      %596 = vmatpush1.bf16.msra.mxu0 0
      %597 = vmatprep.subr.bf16.mxu0 0
      %598 = vmatpush1.bf16.msra.mxu0 0
      %599 = vmatprep.subr.bf16.mxu0 0
      %600 = vmatpush1.bf16.msra.mxu0 %v580
      %601 = vmatprep.subr.bf16.mxu0 0
      %602 = vmatpush1.bf16.msra.mxu0 %v579
      %603 = vmatprep.subr.bf16.mxu0 0
      %604 = vmatpush2.bf16.msra.mxu0 0
      %605 = vmatprep.subr.bf16.mxu0 0
      %606 = vmatpush2.bf16.msra.mxu0 0
      %607 = vmatprep.subr.bf16.mxu0 0
      %608 = vmatpush2.bf16.msra.mxu0 0
      %609 = vmatprep.subr.bf16.mxu0 0
      %610 = vmatpush2.bf16.msra.mxu0 0
      %611 = vmatprep.subr.bf16.mxu0 0
      %612 = vmatpush2.bf16.msra.mxu0 0
      %613 = vmatprep.subr.bf16.mxu0 0
      %614 = vmatpush2.bf16.msra.mxu0 0
      %615 = vmatprep.subr.bf16.mxu0 0
      %616 = vmatpush2.bf16.msra.mxu0 0
      %617 = vmatprep.subr.bf16.mxu0 0
      %618 = vmatpush2.bf16.msra.mxu0 0
      %619 = vmatprep.mubr.bf16.mxu0 0
      %620 = vmatmul.mubr.bf16.gmra.mxu0 %v585
      %v621 = vpop.f32.mrf.mxu0
      %v622 = vadd.f32 0.0, %v621
      %v623 = vpop.f32.mrf.mxu0
      %v624 = vpop.f32.mrf.mxu0
      %v625 = vadd.f32 0.0, %v624
      %v626 = vpop.f32.mrf.mxu0
      %627 = vdwg.mxu0
      %v628 = vld [vmem:[%s5] sm:$0x1]
      %v630 = vlaneseq
      %v631 = vshrl.u32 %v630, 7
      %v632 = vsub.s32 0, %v631
      %v633 = vrot.slane %v628, %v632
      %v635 = vmul.f32 %v622, %v633
      %v636 = vmul.f32 %v625, %v633
      %v637 = vld [vmem:[%s6] sm:$0x1]
      %v639 = vlaneseq
      %v640 = vshrl.u32 %v639, 7
      %v641 = vsub.s32 0, %v640
      %v642 = vrot.slane %v637, %v641
      %v644 = vadd.f32 %v635, %v642
      %v645 = vadd.f32 %v636, %v642
      %v646 = vmax.f32 %v644, 0.0
      %v647 = vmax.f32 %v645, 0.0
      %v648 = vpack.c.bf16 %v647, %v646
      %v649 = vld [vmem:[%s7] sm:$0xf]
      %v650 = vld [vmem:[%s7 + $0x4] sm:$0xf]
      %v651 = vld [vmem:[%s7 + $0x8] sm:$0xf]
      %v652 = vld [vmem:[%s7 + $0xc] sm:$0xf]
      %v657 = vunpack.c.l.b16 %v649
      %v658 = vunpack.c.l.b16 %v650
      %v659 = vunpack.c.l.b16 %v651
      %v660 = vunpack.c.l.b16 %v652
      %v661 = vpack.c.b16 %v658, %v657
      %v662 = vpack.c.b16 %v660, %v659
      %v666 = vsel %vm583, %v648, 0
      %668 = vmatprep.subr.bf16.mxu0 0
      %669 = vmatpush1.bf16.msra.mxu0 0
      %670 = vmatprep.subr.bf16.mxu0 0
      %671 = vmatpush1.bf16.msra.mxu0 0
      %672 = vmatprep.subr.bf16.mxu0 0
      %673 = vmatpush1.bf16.msra.mxu0 0
      %674 = vmatprep.subr.bf16.mxu0 0
      %675 = vmatpush1.bf16.msra.mxu0 0
      %676 = vmatprep.subr.bf16.mxu0 0
      %677 = vmatpush1.bf16.msra.mxu0 0
      %678 = vmatprep.subr.bf16.mxu0 0
      %679 = vmatpush1.bf16.msra.mxu0 0
      %680 = vmatprep.subr.bf16.mxu0 0
      %681 = vmatpush1.bf16.msra.mxu0 %v662
      %682 = vmatprep.subr.bf16.mxu0 0
      %683 = vmatpush1.bf16.msra.mxu0 %v661
      %684 = vmatprep.subr.bf16.mxu0 0
      %685 = vmatpush2.bf16.msra.mxu0 0
      %686 = vmatprep.subr.bf16.mxu0 0
      %687 = vmatpush2.bf16.msra.mxu0 0
      %688 = vmatprep.subr.bf16.mxu0 0
      %689 = vmatpush2.bf16.msra.mxu0 0
      %690 = vmatprep.subr.bf16.mxu0 0
      %691 = vmatpush2.bf16.msra.mxu0 0
      %692 = vmatprep.subr.bf16.mxu0 0
      %693 = vmatpush2.bf16.msra.mxu0 0
      %694 = vmatprep.subr.bf16.mxu0 0
      %695 = vmatpush2.bf16.msra.mxu0 0
      %696 = vmatprep.subr.bf16.mxu0 0
      %697 = vmatpush2.bf16.msra.mxu0 0
      %698 = vmatprep.subr.bf16.mxu0 0
      %699 = vmatpush2.bf16.msra.mxu0 0
      %700 = vmatprep.mubr.bf16.mxu0 0
      %701 = vmatmul.mubr.bf16.gmra.mxu0 %v666
      %v702 = vpop.f32.mrf.mxu0
      %v703 = vadd.f32 0.0, %v702
      %v704 = vpop.f32.mrf.mxu0
      %v705 = vpop.f32.mrf.mxu0
      %v706 = vadd.f32 0.0, %v705
      %v707 = vpop.f32.mrf.mxu0
      %708 = vdwg.mxu0
      %v709 = vld [vmem:[%s8] sm:$0x1]
      %v711 = vlaneseq
      %v712 = vshrl.u32 %v711, 7
      %v713 = vsub.s32 0, %v712
      %v714 = vrot.slane %v709, %v713
      %v716 = vmul.f32 %v703, %v714
      %v717 = vmul.f32 %v706, %v714
      %v718 = vld [vmem:[%s9] sm:$0x1]
      %v720 = vlaneseq
      %v721 = vshrl.u32 %v720, 7
      %v722 = vsub.s32 0, %v721
      %v723 = vrot.slane %v718, %v722
      %v725 = vadd.f32 %v716, %v723
      %v726 = vadd.f32 %v717, %v723
      %v727 = vadd.f32 %v725, %v564
      %v728 = vadd.f32 %v726, %v565
      %v729 = vpack.c.bf16 %v728, %v727
      %s730 = scalar_lea.vmem %s4, 16
      %v731 = vld [vmem:[%s730] sm:$0xf]
      %v732 = vld [vmem:[%s730 + $0x4] sm:$0xf]
      %v733 = vld [vmem:[%s730 + $0x8] sm:$0xf]
      %v734 = vld [vmem:[%s730 + $0xc] sm:$0xf]
      %v739 = vunpack.c.l.b16 %v731
      %v740 = vunpack.c.l.b16 %v732
      %v741 = vunpack.c.l.b16 %v733
      %v742 = vunpack.c.l.b16 %v734
      %v743 = vpack.c.b16 %v740, %v739
      %v744 = vpack.c.b16 %v742, %v741
      %v748 = vsel %vm583, %v729, 0
      %750 = vmatprep.subr.bf16.mxu0 0
      %751 = vmatpush1.bf16.msra.mxu0 0
      %752 = vmatprep.subr.bf16.mxu0 0
      %753 = vmatpush1.bf16.msra.mxu0 0
      %754 = vmatprep.subr.bf16.mxu0 0
      %755 = vmatpush1.bf16.msra.mxu0 0
      %756 = vmatprep.subr.bf16.mxu0 0
      %757 = vmatpush1.bf16.msra.mxu0 0
      %758 = vmatprep.subr.bf16.mxu0 0
      %759 = vmatpush1.bf16.msra.mxu0 0
      %760 = vmatprep.subr.bf16.mxu0 0
      %761 = vmatpush1.bf16.msra.mxu0 0
      %762 = vmatprep.subr.bf16.mxu0 0
      %763 = vmatpush1.bf16.msra.mxu0 %v744
      %764 = vmatprep.subr.bf16.mxu0 0
      %765 = vmatpush1.bf16.msra.mxu0 %v743
      %766 = vmatprep.subr.bf16.mxu0 0
      %767 = vmatpush2.bf16.msra.mxu0 0
      %768 = vmatprep.subr.bf16.mxu0 0
      %769 = vmatpush2.bf16.msra.mxu0 0
      %770 = vmatprep.subr.bf16.mxu0 0
      %771 = vmatpush2.bf16.msra.mxu0 0
      %772 = vmatprep.subr.bf16.mxu0 0
      %773 = vmatpush2.bf16.msra.mxu0 0
      %774 = vmatprep.subr.bf16.mxu0 0
      %775 = vmatpush2.bf16.msra.mxu0 0
      %776 = vmatprep.subr.bf16.mxu0 0
      %777 = vmatpush2.bf16.msra.mxu0 0
      %778 = vmatprep.subr.bf16.mxu0 0
      %779 = vmatpush2.bf16.msra.mxu0 0
      %780 = vmatprep.subr.bf16.mxu0 0
      %781 = vmatpush2.bf16.msra.mxu0 0
      %782 = vmatprep.mubr.bf16.mxu0 0
      %783 = vmatmul.mubr.bf16.gmra.mxu0 %v748
      %v784 = vpop.f32.mrf.mxu0
      %v785 = vadd.f32 0.0, %v784
      %v786 = vpop.f32.mrf.mxu0
      %v787 = vpop.f32.mrf.mxu0
      %v788 = vadd.f32 0.0, %v787
      %v789 = vpop.f32.mrf.mxu0
      %790 = vdwg.mxu0
      %s791 = scalar_lea.vmem %s5, 1
      %v792 = vld [vmem:[%s791] sm:$0x1]
      %v794 = vlaneseq
      %v795 = vshrl.u32 %v794, 7
      %v796 = vsub.s32 0, %v795
      %v797 = vrot.slane %v792, %v796
      %v799 = vmul.f32 %v785, %v797
      %v800 = vmul.f32 %v788, %v797
      %s801 = scalar_lea.vmem %s6, 1
      %v802 = vld [vmem:[%s801] sm:$0x1]
      %v804 = vlaneseq
      %v805 = vshrl.u32 %v804, 7
      %v806 = vsub.s32 0, %v805
      %v807 = vrot.slane %v802, %v806
      %v809 = vadd.f32 %v799, %v807
      %v810 = vadd.f32 %v800, %v807
      %v811 = vmax.f32 %v809, 0.0
      %v812 = vmax.f32 %v810, 0.0
      %v813 = vpack.c.bf16 %v812, %v811
      %s814 = scalar_lea.vmem %s7, 16
      %v815 = vld [vmem:[%s814] sm:$0xf]
      %v816 = vld [vmem:[%s814 + $0x4] sm:$0xf]
      %v817 = vld [vmem:[%s814 + $0x8] sm:$0xf]
      %v818 = vld [vmem:[%s814 + $0xc] sm:$0xf]
      %v823 = vunpack.c.l.b16 %v815
      %v824 = vunpack.c.l.b16 %v816
      %v825 = vunpack.c.l.b16 %v817
      %v826 = vunpack.c.l.b16 %v818
      %v827 = vpack.c.b16 %v824, %v823
      %v828 = vpack.c.b16 %v826, %v825
      %v832 = vsel %vm583, %v813, 0
      %834 = vmatprep.subr.bf16.mxu0 0
      %835 = vmatpush1.bf16.msra.mxu0 0
      %836 = vmatprep.subr.bf16.mxu0 0
      %837 = vmatpush1.bf16.msra.mxu0 0
      %838 = vmatprep.subr.bf16.mxu0 0
      %839 = vmatpush1.bf16.msra.mxu0 0
      %840 = vmatprep.subr.bf16.mxu0 0
      %841 = vmatpush1.bf16.msra.mxu0 0
      %842 = vmatprep.subr.bf16.mxu0 0
      %843 = vmatpush1.bf16.msra.mxu0 0
      %844 = vmatprep.subr.bf16.mxu0 0
      %845 = vmatpush1.bf16.msra.mxu0 0
      %846 = vmatprep.subr.bf16.mxu0 0
      %847 = vmatpush1.bf16.msra.mxu0 %v828
      %848 = vmatprep.subr.bf16.mxu0 0
      %849 = vmatpush1.bf16.msra.mxu0 %v827
      %850 = vmatprep.subr.bf16.mxu0 0
      %851 = vmatpush2.bf16.msra.mxu0 0
      %852 = vmatprep.subr.bf16.mxu0 0
      %853 = vmatpush2.bf16.msra.mxu0 0
      %854 = vmatprep.subr.bf16.mxu0 0
      %855 = vmatpush2.bf16.msra.mxu0 0
      %856 = vmatprep.subr.bf16.mxu0 0
      %857 = vmatpush2.bf16.msra.mxu0 0
      %858 = vmatprep.subr.bf16.mxu0 0
      %859 = vmatpush2.bf16.msra.mxu0 0
      %860 = vmatprep.subr.bf16.mxu0 0
      %861 = vmatpush2.bf16.msra.mxu0 0
      %862 = vmatprep.subr.bf16.mxu0 0
      %863 = vmatpush2.bf16.msra.mxu0 0
      %864 = vmatprep.subr.bf16.mxu0 0
      %865 = vmatpush2.bf16.msra.mxu0 0
      %866 = vmatprep.mubr.bf16.mxu0 0
      %867 = vmatmul.mubr.bf16.gmra.mxu0 %v832
      %v868 = vpop.f32.mrf.mxu0
      %v869 = vadd.f32 0.0, %v868
      %v870 = vpop.f32.mrf.mxu0
      %v871 = vpop.f32.mrf.mxu0
      %v872 = vadd.f32 0.0, %v871
      %v873 = vpop.f32.mrf.mxu0
      %874 = vdwg.mxu0
      %s875 = scalar_lea.vmem %s8, 1
      %v876 = vld [vmem:[%s875] sm:$0x1]
      %v878 = vlaneseq
      %v879 = vshrl.u32 %v878, 7
      %v880 = vsub.s32 0, %v879
      %v881 = vrot.slane %v876, %v880
      %v883 = vmul.f32 %v869, %v881
      %v884 = vmul.f32 %v872, %v881
      %s885 = scalar_lea.vmem %s9, 1
      %v886 = vld [vmem:[%s885] sm:$0x1]
      %v888 = vlaneseq
      %v889 = vshrl.u32 %v888, 7
      %v890 = vsub.s32 0, %v889
      %v891 = vrot.slane %v886, %v890
      %v893 = vadd.f32 %v883, %v891
      %v894 = vadd.f32 %v884, %v891
      %v895 = vadd.f32 %v893, %v727
      %v896 = vadd.f32 %v894, %v728
      %v897 = vpack.c.bf16 %v896, %v895
      %v898 = vld [vmem:[%s10] sm:$0xf]
      %v899 = vld [vmem:[%s10 + $0x4] sm:$0xf]
      %v900 = vld [vmem:[%s10 + $0x8] sm:$0xf]
      %v901 = vld [vmem:[%s10 + $0xc] sm:$0xf]
      %v902 = vld [vmem:[%s11] sm:$0x1]
      %v904 = vlaneseq
      %v905 = vshrl.u32 %v904, 7
      %v906 = vsub.s32 0, %v905
      %v907 = vrot.slane %v902, %v906
      %v913 = vunpack.c.l.b16 %v898
      %v914 = vunpack.c.l.b16 %v899
      %v915 = vunpack.c.l.b16 %v900
      %v916 = vunpack.c.l.b16 %v901
      %v917 = vpack.c.b16 %v914, %v913
      %v918 = vpack.c.b16 %v916, %v915
      %v922 = vsel %vm583, %v897, 0
      %924 = vmatprep.subr.bf16.mxu0 0
      %925 = vmatpush1.bf16.msra.mxu0 0
      %926 = vmatprep.subr.bf16.mxu0 0
      %927 = vmatpush1.bf16.msra.mxu0 0
      %928 = vmatprep.subr.bf16.mxu0 0
      %929 = vmatpush1.bf16.msra.mxu0 0
      %930 = vmatprep.subr.bf16.mxu0 0
      %931 = vmatpush1.bf16.msra.mxu0 0
      %932 = vmatprep.subr.bf16.mxu0 0
      %933 = vmatpush1.bf16.msra.mxu0 0
      %934 = vmatprep.subr.bf16.mxu0 0
      %935 = vmatpush1.bf16.msra.mxu0 0
      %936 = vmatprep.subr.bf16.mxu0 0
      %937 = vmatpush1.bf16.msra.mxu0 %v918
      %938 = vmatprep.subr.bf16.mxu0 0
      %939 = vmatpush1.bf16.msra.mxu0 %v917
      %940 = vmatprep.subr.bf16.mxu0 0
      %941 = vmatpush2.bf16.msra.mxu0 0
      %942 = vmatprep.subr.bf16.mxu0 0
      %943 = vmatpush2.bf16.msra.mxu0 0
      %944 = vmatprep.subr.bf16.mxu0 0
      %945 = vmatpush2.bf16.msra.mxu0 0
      %946 = vmatprep.subr.bf16.mxu0 0
      %947 = vmatpush2.bf16.msra.mxu0 0
      %948 = vmatprep.subr.bf16.mxu0 0
      %949 = vmatpush2.bf16.msra.mxu0 0
      %950 = vmatprep.subr.bf16.mxu0 0
      %951 = vmatpush2.bf16.msra.mxu0 0
      %952 = vmatprep.subr.bf16.mxu0 0
      %953 = vmatpush2.bf16.msra.mxu0 0
      %954 = vmatprep.subr.bf16.mxu0 0
      %955 = vmatpush2.bf16.msra.mxu0 0
      %956 = vmatprep.mubr.bf16.mxu0 0
      %957 = vmatmul.mubr.bf16.gmra.mxu0 %v922
      %v958 = vpop.f32.mrf.mxu0
      %v959 = vadd.f32 %v907, %v958
      %v960 = vpop.f32.mrf.mxu0
      %v961 = vpop.f32.mrf.mxu0
      %v962 = vadd.f32 %v907, %v961
      %v963 = vpop.f32.mrf.mxu0
      %964 = vdwg.mxu0
      %vm965 = vcmask 130048
      %966 = vst.msk [vmem:[%s451] sm:$0xff] %vm965, %v959
      %vm967 = vcmask 125952
      %968 = vst.msk [vmem:[%s451 + $0x8] sm:$0xf] %vm967, %v962
      %s969 = smul.u32 2, %s28
      %p970 = scmp.lt.s32.totalorder %s27, 1
      %s971 = scalar_select %p970, %s27, 1
      %p972 = scmp.lt.s32.totalorder %s969, 1
      %s973 = scalar_select %p972, %s969, 1
      %s974 = smul.addr %s971, 2
      %s975 = sadd.s32 %s973, %s974
      %s976 = smul.addr %s975, 8
      %s977 = scalar_lea.vmem %s12, %s976
      // Predicated region
      $region69: #{upsample_network_forward.3} parent=67 // pred_check
        %p978 = pneg %p314
      $region70: #{upsample_network_forward.3} parent=67 // pred_check_branch
        %980 = sbr.rel (%p978) target = $region72
      $region71: #{upsample_network_forward.3} parent=67 // pred_region
        %s981 = smul.u32 2, %s28
      $region72: #{upsample_network_forward.3} parent=67 // pred_fallthru
        _
    $region68: #{upsample_network_forward.3} parent=5 // pred_fallthru
      _
    %p982 = scmp.le.s32.totalorder 2, %s18
    // Predicated region
    $region73: #{upsample_network_forward.3} parent=5 // pred_check
      %p983 = pneg %p982
    $region74: #{upsample_network_forward.3} parent=5 // pred_check_branch
      %985 = sbr.rel (%p983) target = $region76
    $region75: #{upsample_network_forward.3} parent=5 // pred_region
      %s986 = ssub.s32 %s18, 2
      // Predicated region
      $region77: #{upsample_network_forward.3} parent=75 // pred_check
        %p987 = pneg %p320
      $region78: #{upsample_network_forward.3} parent=75 // pred_check_branch
        %989 = sbr.rel (%p987) target = $region80
      $region79: #{upsample_network_forward.3} parent=75 // pred_region
        %s990 = smul.u32 2, %s30
        %p991 = scmp.lt.s32.totalorder %s29, 1
        %s992 = scalar_select %p991, %s29, 1
        %p993 = scmp.lt.s32.totalorder %s990, 1
        %s994 = scalar_select %p993, %s990, 1
        %s995 = smul.addr %s992, 2
        %s996 = sadd.s32 %s994, %s995
        %s997 = smul.addr %s996, 8
        %s998 = scalar_lea.vmem %s12, %s997
      $region80: #{upsample_network_forward.3} parent=75 // pred_fallthru
        _
    $region76: #{upsample_network_forward.3} parent=5 // pred_fallthru
      _
  $region6: #{upsample_network_forward.3} parent=0 // loop_footer
    %s22 = sadd.s32 1, %s18
  $region7: #{upsample_network_forward.3} parent=0 // loop_footer_branch
    %17 = sbr.rel target = $region3
  $region8: #{upsample_network_forward.3} parent=0 // loop_exit
    _

</llo_original>
